<compile_context>
chip_gen: v7x
topology: tpu7x:2x2x1
jax: 0.10.0
libtpu: 0.0.40
codegen_flags: <defaults>
</compile_context>

<pallas_src>
import functools
import math

import jax
import jax.numpy as jnp
from jax import lax
from jax.experimental import pallas as pl
from jax.experimental.pallas import tpu as pltpu


def _round_up(x, m):
    return ((x + m - 1) // m) * m


def _mlp_kernel(*refs, n_parts, chunk, mm_dtype):
    """Fused Linear->ReLU->Linear->ReLU->Linear->Sigmoid over one bm-row tile.

    refs = (x_part_0..x_part_{n_parts-1},        # (bm, d_k)  streamed row tiles
            w1_part_0..w1_part_{n_parts-1},      # (d_k, 128) resident
            b1,                                  # (1, 128)   resident
            w2t,                                 # (32, 128)  resident (W2^T)
            tail,                                # (32, 3)    packed [w3 | b2 | b3@(0,2)]
            o)                                   # (n_chunks, chunk) lane-dense output

    The bm-row DMA tile is processed in `chunk`-row sub-chunks so live h1/h2t
    intermediates stay small regardless of bm.
    """
    x_refs = refs[:n_parts]
    w1_refs = refs[n_parts:2 * n_parts]
    b1_ref, w2t_ref, tail_ref, o_ref = refs[2 * n_parts:]

    n_chunks = o_ref.shape[0]

    # Hoist small resident operands (and their casts) out of the chunk loop.
    w1s = [r[...].astype(mm_dtype) for r in w1_refs]
    b1 = b1_ref[...]                          # (1, 128)  f32
    w2t = w2t_ref[...].astype(mm_dtype)       # (32, 128)
    w3c = tail_ref[:, 0:1]                    # (32, 1)   f32
    b2c = tail_ref[:, 1:2]                    # (32, 1)   f32
    b3 = tail_ref[0, 2]                       # scalar    f32

    def chunk_body(c, carry):
        off = pl.multiple_of(c * chunk, 128)

        # Layer 1 (MXU, f32 accumulation). Summing per-part partial products
        # realizes the heads|tails feature concat without materializing it.
        h1 = None
        for x_ref, w1 in zip(x_refs, w1s):
            xs = x_ref[pl.ds(off, chunk), :].astype(mm_dtype)
            p = jnp.dot(xs, w1, preferred_element_type=jnp.float32)
            h1 = p if h1 is None else h1 + p
        h1 = jnp.maximum(h1 + b1, 0.0)                                # (chunk, 128)

        # Layer 2 (MXU, transposed result): contract the 128-dim of both
        # operands so the batch rows land on lanes.
        h2t = lax.dot_general(
            w2t, h1.astype(mm_dtype),
            dimension_numbers=(((1,), (1,)), ((), ())),
            preferred_element_type=jnp.float32)
        h2t = jnp.maximum(h2t + b2c, 0.0)                             # (32, chunk)

        # Layer 3 (VPU mul + XLU sublane reduce) -> lane-dense sigmoid row.
        logits = jnp.sum(h2t * w3c, axis=0, keepdims=True) + b3       # (1, chunk)
        o_ref[pl.ds(c, 1), :] = jax.nn.sigmoid(logits).astype(o_ref.dtype)
        return carry

    lax.fori_loop(0, n_chunks, chunk_body, 0, unroll=True)


@functools.partial(jax.jit,
                   static_argnames=("block_rows", "chunk_rows", "use_bf16"))
def _forward_parts(parts, w1_parts, b1, w2, b2, w3, b3, *,
                   block_rows, chunk_rows, use_bf16):
    """Shared impl: score rows whose features are split across `parts`."""
    n = parts[0].shape[0]
    h1_dim = w1_parts[0].shape[1]             # 128
    h2_dim = w2.shape[1]                      # 32

    # Row tiling: big DMA tiles (amortize the ~0.35us/step pipeline overhead),
    # processed in `chunk`-row sub-chunks inside the kernel.
    bm = max(128, min(block_rows, _round_up(n, 128)))
    bm = _round_up(bm, 128)
    chunk = min(_round_up(chunk_rows, 128), bm)
    bm = max(chunk, (bm // chunk) * chunk)    # bm is a multiple of chunk
    n_chunks = bm // chunk
    n_blocks = pl.cdiv(n, bm)
    # TODO(synk): on v7x (2 TCs) pick block_rows so n_blocks >= 2, letting the
    # "parallel" grid axis shard across both cores.

    mm_dtype = jnp.bfloat16 if use_bf16 else jnp.float32

    # Small resident operands, pre-arranged for the lane-dense tail.
    w2t = jnp.transpose(w2)                                    # (32, 128)
    tail = jnp.zeros((h2_dim, 3), jnp.float32)
    tail = tail.at[:, 0].set(w3.reshape(h2_dim).astype(jnp.float32))
    tail = tail.at[:, 1].set(b2.reshape(h2_dim).astype(jnp.float32))
    tail = tail.at[0, 2].set(b3.reshape(()).astype(jnp.float32))

    kernel = functools.partial(_mlp_kernel, n_parts=len(parts),
                               chunk=chunk, mm_dtype=mm_dtype)

    in_specs = (
        [pl.BlockSpec((bm, p.shape[1]), lambda i: (i, 0)) for p in parts] +
        [pl.BlockSpec((w.shape[0], h1_dim), lambda i: (0, 0)) for w in w1_parts] +
        [pl.BlockSpec((1, h1_dim), lambda i: (0, 0)),          # b1
         pl.BlockSpec((h2_dim, h1_dim), lambda i: (0, 0)),     # W2^T
         pl.BlockSpec((h2_dim, 3), lambda i: (0, 0))])         # packed tail

    out = pl.pallas_call(
        kernel,
        out_shape=jax.ShapeDtypeStruct((n_blocks, n_chunks, chunk), jnp.float32),
        grid_spec=pltpu.PrefetchScalarGridSpec(
            num_scalar_prefetch=0,
            grid=(n_blocks,),
            in_specs=in_specs,
            out_specs=pl.BlockSpec((None, n_chunks, chunk), lambda i: (i, 0, 0)),
        ),
        compiler_params=pltpu.CompilerParams(
            dimension_semantics=("parallel",)),
    )(*parts, *w1_parts, b1.reshape(1, h1_dim), w2t, tail)

    # Layout plumbing only: (n_blocks, n_chunks, chunk) -> (N, 1); padded tail
    # rows (undefined values) are sliced off here.
    return out.reshape(n_blocks * n_chunks * chunk, 1)[:n]


def _resolve_bf16(use_bf16):
    if use_bf16 is None:
        # bf16 MXU operands only on real TPUs; plain f32 elsewhere (e.g. the CPU
        # interpret path, whose DotThunk does not support BF16 x BF16 = F32).
        return jax.default_backend() == "tpu"
    return bool(use_bf16)


def predicting_layer_forward(x, params, *, block_rows=8192, chunk_rows=2048,
                             use_bf16=None):
    """PredictingLayer.forward: x (N, 2*embed_dim) -> (N, 1) sigmoid ratings."""
    return _forward_parts(
        (x,), (params["w1"],), params["b1"], params["w2"], params["b2"],
        params["w3"], params["b3"],
        block_rows=block_rows, chunk_rows=chunk_rows,
        use_bf16=_resolve_bf16(use_bf16))


def predicting_pair_forward(heads, tails, params, *, block_rows=8192,
                            chunk_rows=2048, use_bf16=None):
    """Score (heads, tails) row pairs without materializing the HBM concat:
    W1 is split so h1 = heads @ W1[:E] + tails @ W1[E:]."""
    e = heads.shape[1]
    w1 = params["w1"]
    return _forward_parts(
        (heads, tails), (w1[:e], w1[e:]), params["b1"], params["w2"],
        params["b2"], params["w3"], params["b3"],
        block_rows=block_rows, chunk_rows=chunk_rows,
        use_bf16=_resolve_bf16(use_bf16))


def predicting_module_forward(graph_edges, h, params, **kw):
    """JAX equivalent of PredictingModule.forward.

    graph_edges: {(utype, ename, vtype): (src_nid, dst_nid)} int arrays.
    h: {ntype: (num_nodes, embed_dim) float array}.
    """
    # TODO(synk): DGL graph traversal (graph.canonical_etypes / graph.all_edges)
    # is host-side bookkeeping; represented here as explicit edge-index dicts.
    # TODO(synk): the per-edge embedding gather could additionally be fused into
    # the kernel (scalar-prefetch indices + per-row DMA) for huge tables; here
    # XLA performs the gather and the kernel consumes the two gathered streams
    # directly, so no concatenated (E, 2E) array is ever written to HBM.
    ratings = {}
    for etype, (src, dst) in graph_edges.items():
        utype, _, vtype = etype
        if utype in ("customer", "product") and vtype in ("customer", "product"):
            ratings[etype] = predicting_pair_forward(
                h[utype][src], h[vtype][dst], params, **kw)        # (E, 1)
    return ratings


def init_params(key, embed_dim):
    """Init matching PredictingLayer.reset_parameters.

    Weights: xavier_uniform with gain('relu')=sqrt(2) for hidden layers and
    gain('sigmoid')=1 for the output. Biases: PyTorch Linear default
    U(-1/sqrt(fan_in), 1/sqrt(fan_in)). Stored as (in_features, out_features).
    """
    d_in = embed_dim * 2
    dims = [(d_in, 128), (128, 32), (32, 1)]
    gains = [math.sqrt(2.0), math.sqrt(2.0), 1.0]
    keys = jax.random.split(key, 6)
    params = {}
    for idx, ((fan_in, fan_out), gain) in enumerate(zip(dims, gains)):
        wb = gain * math.sqrt(6.0 / (fan_in + fan_out))
        params[f"w{idx + 1}"] = jax.random.uniform(
            keys[2 * idx], (fan_in, fan_out), jnp.float32, -wb, wb)
        bb = 1.0 / math.sqrt(fan_in)
        params[f"b{idx + 1}"] = jax.random.uniform(
            keys[2 * idx + 1], (1, fan_out), jnp.float32, -bb, bb)
    return params


def reference_forward(x, p):
    h1 = jnp.maximum(x @ p["w1"] + p["b1"], 0.0)
    h2 = jnp.maximum(h1 @ p["w2"] + p["b2"], 0.0)
    return jax.nn.sigmoid(h2 @ p["w3"] + p["b3"])


if __name__ == "__main__":
    embed_dim = 32                       # -> input feature dim = 64
    key = jax.random.PRNGKey(0)
    k_x, k_p, k_hc, k_hp, k_e = jax.random.split(key, 5)

    params = init_params(k_p, embed_dim)

    # --- PredictingLayer on a pre-concatenated input ------------------------
    batch = 1000                         # not a tile multiple: exercises cdiv grid
    x = jax.random.normal(k_x, (batch, embed_dim * 2), dtype=jnp.float32)
    ref = reference_forward(x, params)

    # f32 matmul path: tight check against the pure-JAX reference.
    out_f32 = jax.block_until_ready(
        predicting_layer_forward(x, params, use_bf16=False))
    assert out_f32.shape == (batch, 1), out_f32.shape
    assert jnp.allclose(out_f32, ref, atol=3e-3, rtol=3e-3), \
        float(jnp.max(jnp.abs(out_f32 - ref)))

    # Default dtype policy (bf16 MXU operands on TPU, f32 elsewhere) with small
    # tiles so the multi-block / multi-chunk path is exercised:
    # bm=512, chunk=256 -> n_chunks=2, grid=2, partial last block.
    out_small = jax.block_until_ready(
        predicting_layer_forward(x, params, block_rows=512, chunk_rows=256))
    assert out_small.shape == (batch, 1), out_small.shape
    assert jnp.allclose(out_small, ref, atol=3e-2, rtol=3e-2), \
        float(jnp.max(jnp.abs(out_small - ref)))

    # --- PredictingModule path (gather heads/tails, fused concat, score) ----
    n_cust, n_prod, n_edges = 40, 60, 37
    h = {"customer": jax.random.normal(k_hc, (n_cust, embed_dim), jnp.float32),
         "product": jax.random.normal(k_hp, (n_prod, embed_dim), jnp.float32)}
    k_src, k_dst = jax.random.split(k_e)
    et = ("customer", "buys", "product")
    edges = {et: (jax.random.randint(k_src, (n_edges,), 0, n_cust),
                  jax.random.randint(k_dst, (n_edges,), 0, n_prod))}
    ratings = predicting_module_forward(edges, h, params)
    r = jax.block_until_ready(ratings[et])
    cat = jnp.concatenate([h["customer"][edges[et][0]],
                           h["product"][edges[et][1]]], axis=1)
    ref_r = reference_forward(cat, params)
    assert r.shape == (n_edges, 1), r.shape
    assert jnp.allclose(r, ref_r, atol=3e-2, rtol=3e-2), \
        float(jnp.max(jnp.abs(r - ref_r)))

    print("KERNEL_OK")
</pallas_src>

<mosaic_0001>
module attributes {stable_mosaic.version = 11 : i64} {
  func.func @_mlp_kernel(%arg0: i32, %arg1: memref<1024x64xf32, #tpu.memory_space<vmem>>, %arg2: memref<64x128xf32, #tpu.memory_space<vmem>>, %arg3: memref<1x128xf32, #tpu.memory_space<vmem>>, %arg4: memref<32x128xf32, #tpu.memory_space<vmem>>, %arg5: memref<32x3xf32, #tpu.memory_space<vmem>>, %arg6: memref<1x1x1024xf32, #tpu.memory_space<vmem>>) attributes {dimension_semantics = [#tpu.dimension_semantics<parallel>], iteration_bounds = array<i64: 1>, scalar_prefetch = 0 : i64, scratch_operands = 0 : i64, tpu.core_type = #tpu.core_type<tc>, window_params = [{transform_indices = @transform_0, window_bounds = array<i64: 1024, 64>}, {pipeline_mode = #tpu.pipeline_mode<synchronous>, transform_indices = @transform_1, window_bounds = array<i64: 64, 128>}, {pipeline_mode = #tpu.pipeline_mode<synchronous>, transform_indices = @transform_2, window_bounds = array<i64: 1, 128>}, {pipeline_mode = #tpu.pipeline_mode<synchronous>, transform_indices = @transform_3, window_bounds = array<i64: 32, 128>}, {pipeline_mode = #tpu.pipeline_mode<synchronous>, transform_indices = @transform_4, window_bounds = array<i64: 32, 3>}, {transform_indices = @transform_5, window_bounds = array<i64: 1, 1, 1024>}]} {
    %c0 = arith.constant 0 : index
    %c0_0 = arith.constant 0 : index
    %0 = vector.load %arg2[%c0, %c0_0] : memref<64x128xf32, #tpu.memory_space<vmem>>, vector<64x128xf32>
    %c0_1 = arith.constant 0 : index
    %c0_2 = arith.constant 0 : index
    %1 = vector.load %arg3[%c0_1, %c0_2] : memref<1x128xf32, #tpu.memory_space<vmem>>, vector<1x128xf32>
    %c0_3 = arith.constant 0 : index
    %c0_4 = arith.constant 0 : index
    %2 = vector.load %arg4[%c0_3, %c0_4] : memref<32x128xf32, #tpu.memory_space<vmem>>, vector<32x128xf32>
    %c0_5 = arith.constant 0 : index
    %c0_6 = arith.constant 0 : index
    %3 = vector.load %arg5[%c0_5, %c0_6] : memref<32x3xf32, #tpu.memory_space<vmem>>, vector<32x1xf32>
    %c0_7 = arith.constant 0 : index
    %c1 = arith.constant 1 : index
    %4 = vector.load %arg5[%c0_7, %c1] : memref<32x3xf32, #tpu.memory_space<vmem>>, vector<32x1xf32>
    %c0_8 = arith.constant 0 : index
    %c2 = arith.constant 2 : index
    %5 = vector.load %arg5[%c0_8, %c2] : memref<32x3xf32, #tpu.memory_space<vmem>>, vector<1x1xf32>
    %6 = vector.extract %5[0, 0] : f32 from vector<1x1xf32>
    %c0_i32 = arith.constant 0 : i32
    %c1024_i32 = arith.constant 1024 : i32
    %7 = arith.muli %c0_i32, %c1024_i32 : i32
    %8 = tpu.assume_multiple %7, 128 : i32
    %9 = arith.index_cast %8 : i32 to index
    %c0_9 = arith.constant 0 : index
    %10 = vector.load %arg1[%9, %c0_9] : memref<1024x64xf32, #tpu.memory_space<vmem>>, vector<1024x64xf32>
    %cst = arith.constant dense<0.000000e+00> : vector<1024x128xf32>
    %11 = tpu.matmul %10, %0, %cst {dimension_numbers = #tpu.dot_dimension_numbers<[1], [0], [0], [1], [0, 0, 1, 1], [], []>} : vector<1024x64xf32>, vector<64x128xf32>, vector<1024x128xf32> -> vector<1024x128xf32>
    %12 = vector.broadcast %1 : vector<1x128xf32> to vector<1024x128xf32>
    %13 = arith.addf %11, %12 : vector<1024x128xf32>
    %cst_10 = arith.constant 0.000000e+00 : f32
    %14 = vector.broadcast %cst_10 : f32 to vector<1024x128xf32>
    %15 = arith.maximumf %13, %14 : vector<1024x128xf32>
    %cst_11 = arith.constant dense<0.000000e+00> : vector<32x1024xf32>
    %16 = tpu.matmul %2, %15, %cst_11 {dimension_numbers = #tpu.dot_dimension_numbers<[1], [1], [0], [0], [0, 0, 1, 0], [], []>} : vector<32x128xf32>, vector<1024x128xf32>, vector<32x1024xf32> -> vector<32x1024xf32>
    %17 = vector.broadcast %4 : vector<32x1xf32> to vector<32x1024xf32>
    %18 = arith.addf %16, %17 : vector<32x1024xf32>
    %cst_12 = arith.constant 0.000000e+00 : f32
    %19 = vector.broadcast %cst_12 : f32 to vector<32x1024xf32>
    %20 = arith.maximumf %18, %19 : vector<32x1024xf32>
    %21 = vector.broadcast %3 : vector<32x1xf32> to vector<32x1024xf32>
    %22 = arith.mulf %20, %21 : vector<32x1024xf32>
    %cst_13 = arith.constant dense<0.000000e+00> : vector<1024xf32>
    %23 = vector.multi_reduction <add>, %22, %cst_13 [0] : vector<32x1024xf32> to vector<1024xf32>
    %24 = vector.shape_cast %23 : vector<1024xf32> to vector<1x1024xf32>
    %25 = vector.broadcast %6 : f32 to vector<1x1024xf32>
    %26 = arith.addf %24, %25 : vector<1x1024xf32>
    %27 = arith.negf %26 : vector<1x1024xf32>
    %28 = math.exp %27 : vector<1x1024xf32>
    %cst_14 = arith.constant 1.000000e+00 : f32
    %29 = vector.broadcast %cst_14 : f32 to vector<1x1024xf32>
    %30 = arith.addf %29, %28 : vector<1x1024xf32>
    %31 = arith.divf %29, %30 : vector<1x1024xf32>
    %c0_15 = arith.constant 0 : index
    %32 = arith.index_cast %c0_i32 : i32 to index
    %c0_16 = arith.constant 0 : index
    %33 = vector.load %arg6[%c0_15, %32, %c0_16] : memref<1x1x1024xf32, #tpu.memory_space<vmem>>, vector<1x1x1024xf32>
    %34 = vector.shape_cast %33 : vector<1x1x1024xf32> to vector<1x1024xf32>
    %35 = vector.shape_cast %31 : vector<1x1024xf32> to vector<1x1x1024xf32>
    tpu.vector_store %arg6[%c0_15, %32, %c0_16], %35 {strides = array<i32>} : memref<1x1x1024xf32, #tpu.memory_space<vmem>>, vector<1x1x1024xf32>,
    %c1_i32 = arith.constant 1 : i32
    return
  }
  func.func @transform_0(%arg0: i32) -> (i32, i32) {
    %c0_i32 = arith.constant 0 : i32
    %c0_i32_0 = arith.constant 0 : i32
    return %arg0, %c0_i32 : i32, i32
  }
  func.func @transform_1(%arg0: i32) -> (i32, i32) {
    %c0_i32 = arith.constant 0 : i32
    %c0_i32_0 = arith.constant 0 : i32
    %c0_i32_1 = arith.constant 0 : i32
    return %c0_i32, %c0_i32_0 : i32, i32
  }
  func.func @transform_2(%arg0: i32) -> (i32, i32) {
    %c0_i32 = arith.constant 0 : i32
    %c0_i32_0 = arith.constant 0 : i32
    %c0_i32_1 = arith.constant 0 : i32
    return %c0_i32, %c0_i32_0 : i32, i32
  }
  func.func @transform_3(%arg0: i32) -> (i32, i32) {
    %c0_i32 = arith.constant 0 : i32
    %c0_i32_0 = arith.constant 0 : i32
    %c0_i32_1 = arith.constant 0 : i32
    return %c0_i32, %c0_i32_0 : i32, i32
  }
  func.func @transform_4(%arg0: i32) -> (i32, i32) {
    %c0_i32 = arith.constant 0 : i32
    %c0_i32_0 = arith.constant 0 : i32
    %c0_i32_1 = arith.constant 0 : i32
    return %c0_i32, %c0_i32_0 : i32, i32
  }
  func.func @transform_5(%arg0: i32) -> (i32, i32, i32) {
    %c0_i32 = arith.constant 0 : i32
    %c0_i32_0 = arith.constant 0 : i32
    %c0_i32_1 = arith.constant 0 : i32
    return %arg0, %c0_i32, %c0_i32_0 : i32, i32, i32
  }
}

</mosaic_0001>

<llo_original>
// kernel: _forward_parts.1
$region0: #{_forward_parts.1}
  #allocation0 [shape = 'u32[]', space=smem, size = 0x4, offset = 0x4, fixed_abs, tag = 'smem constant byte address 0x4 - core index']
  #allocation1 [shape = 'u32[144,128]{1,0:T(1,128)}', space=vmem, size = 0x12000, scoped, tag = 'internal scratch']
  %s0 = inlined_call_operand.vmem [shape: f32[1000,64], index: 0, kind: input, shape index: {}]
  %s1 = inlined_call_operand.vmem [shape: f32[64,128], index: 1, kind: input, shape index: {}]
  %s2 = inlined_call_operand.vmem [shape: f32[1,128], index: 2, kind: input, shape index: {}]
  %s3 = inlined_call_operand.vmem [shape: f32[32,128], index: 3, kind: input, shape index: {}]
  %s4 = inlined_call_operand.vmem [shape: f32[32,3], index: 4, kind: input, shape index: {}]
  %s5 = inlined_call_operand.vmem [shape: f32[1,1,1024], index: 5, kind: output, shape index: {}]
  %s6 = sld [smem:[#allocation0]]
  $region30: #{_forward_parts.1} parent=0
    _
  %s8 = ssub.s32 1, %s6
  %s9 = scalar_select 0, %s8, %s6
  // Predicated region
  $region2: #{_forward_parts.1} parent=0 // pred_check
    _
  $region3: #{_forward_parts.1} parent=0 // pred_check_branch
    %11 = sbr.rel (0) target = $region5
  $region4: #{_forward_parts.1} parent=0 // pred_region
    _
  $region5: #{_forward_parts.1} parent=0 // pred_fallthru
    _
  // Predicated region
  $region6: #{_forward_parts.1} parent=0 // pred_check
    _
  $region7: #{_forward_parts.1} parent=0 // pred_check_branch
    %13 = sbr.rel (0) target = $region9
  $region8: #{_forward_parts.1} parent=0 // pred_region
    _
  $region9: #{_forward_parts.1} parent=0 // pred_fallthru
    _
  // Predicated region
  $region10: #{_forward_parts.1} parent=0 // pred_check
    _
  $region11: #{_forward_parts.1} parent=0 // pred_check_branch
    %15 = sbr.rel (0) target = $region13
  $region12: #{_forward_parts.1} parent=0 // pred_region
    _
  $region13: #{_forward_parts.1} parent=0 // pred_fallthru
    _
  // Predicated region
  $region14: #{_forward_parts.1} parent=0 // pred_check
    _
  $region15: #{_forward_parts.1} parent=0 // pred_check_branch
    %17 = sbr.rel (0) target = $region17
  $region16: #{_forward_parts.1} parent=0 // pred_region
    _
  $region17: #{_forward_parts.1} parent=0 // pred_fallthru
    _
  // Predicated region
  $region18: #{_forward_parts.1} parent=0 // pred_check
    _
  $region19: #{_forward_parts.1} parent=0 // pred_check_branch
    %19 = sbr.rel (0) target = $region21
  $region20: #{_forward_parts.1} parent=0 // pred_region
    _
  $region21: #{_forward_parts.1} parent=0 // pred_fallthru
    _
  %v20 = vld [vmem:[%s1] sm:$0xff]
  %v21 = vld [vmem:[%s1 + $0x8] sm:$0xff]
  %v22 = vld [vmem:[%s1 + $0x10] sm:$0xff]
  %v23 = vld [vmem:[%s1 + $0x18] sm:$0xff]
  %v24 = vld [vmem:[%s1 + $0x20] sm:$0xff]
  %v25 = vld [vmem:[%s1 + $0x28] sm:$0xff]
  %v26 = vld [vmem:[%s1 + $0x30] sm:$0xff]
  %v27 = vld [vmem:[%s1 + $0x38] sm:$0xff]
  %v28 = vld [vmem:[%s2] sm:$0x1]
  %v29 = vld [vmem:[%s3] sm:$0xff]
  %v30 = vld [vmem:[%s3 + $0x8] sm:$0xff]
  %v31 = vld [vmem:[%s3 + $0x10] sm:$0xff]
  %v32 = vld [vmem:[%s3 + $0x18] sm:$0xff]
  %v33 = vld [vmem:[%s4] sm:$0xff]
  %v34 = vld [vmem:[%s4 + $0x8] sm:$0xff]
  %v35 = vld [vmem:[%s4 + $0x10] sm:$0xff]
  %v36 = vld [vmem:[%s4 + $0x18] sm:$0xff]
  %v37 = vld [vmem:[%s4] sm:$0x1]
  %39 = vrot.lane.b32.xlu0 %v37, 126
  %v40 = vpop.permute.xlu0 %39
  %s42 = vtos %v40
  %v43 = vld [vmem:[%s0] sm:$0xff]
  %v44 = vld [vmem:[%s0 + $0x8] sm:$0xff]
  %v45 = vld [vmem:[%s0 + $0x10] sm:$0xff]
  %v46 = vld [vmem:[%s0 + $0x18] sm:$0xff]
  %v47 = vld [vmem:[%s0 + $0x20] sm:$0xff]
  %v48 = vld [vmem:[%s0 + $0x28] sm:$0xff]
  %v49 = vld [vmem:[%s0 + $0x30] sm:$0xff]
  %v50 = vld [vmem:[%s0 + $0x38] sm:$0xff]
  %v51 = vld [vmem:[%s0 + $0x40] sm:$0xff]
  %v52 = vld [vmem:[%s0 + $0x48] sm:$0xff]
  %v53 = vld [vmem:[%s0 + $0x50] sm:$0xff]
  %v54 = vld [vmem:[%s0 + $0x58] sm:$0xff]
  %v55 = vld [vmem:[%s0 + $0x60] sm:$0xff]
  %v56 = vld [vmem:[%s0 + $0x68] sm:$0xff]
  %v57 = vld [vmem:[%s0 + $0x70] sm:$0xff]
  %v58 = vld [vmem:[%s0 + $0x78] sm:$0xff]
  %v59 = vld [vmem:[%s0 + $0x80] sm:$0xff]
  %v60 = vld [vmem:[%s0 + $0x88] sm:$0xff]
  %v61 = vld [vmem:[%s0 + $0x90] sm:$0xff]
  %v62 = vld [vmem:[%s0 + $0x98] sm:$0xff]
  %v63 = vld [vmem:[%s0 + $0xa0] sm:$0xff]
  %v64 = vld [vmem:[%s0 + $0xa8] sm:$0xff]
  %v65 = vld [vmem:[%s0 + $0xb0] sm:$0xff]
  %v66 = vld [vmem:[%s0 + $0xb8] sm:$0xff]
  %v67 = vld [vmem:[%s0 + $0xc0] sm:$0xff]
  %v68 = vld [vmem:[%s0 + $0xc8] sm:$0xff]
  %v69 = vld [vmem:[%s0 + $0xd0] sm:$0xff]
  %v70 = vld [vmem:[%s0 + $0xd8] sm:$0xff]
  %v71 = vld [vmem:[%s0 + $0xe0] sm:$0xff]
  %v72 = vld [vmem:[%s0 + $0xe8] sm:$0xff]
  %v73 = vld [vmem:[%s0 + $0xf0] sm:$0xff]
  %v74 = vld [vmem:[%s0 + $0xf8] sm:$0xff]
  %v75 = vld [vmem:[%s0 + $0x100] sm:$0xff]
  %v76 = vld [vmem:[%s0 + $0x108] sm:$0xff]
  %v77 = vld [vmem:[%s0 + $0x110] sm:$0xff]
  %v78 = vld [vmem:[%s0 + $0x118] sm:$0xff]
  %v79 = vld [vmem:[%s0 + $0x120] sm:$0xff]
  %v80 = vld [vmem:[%s0 + $0x128] sm:$0xff]
  %v81 = vld [vmem:[%s0 + $0x130] sm:$0xff]
  %v82 = vld [vmem:[%s0 + $0x138] sm:$0xff]
  %v83 = vld [vmem:[%s0 + $0x140] sm:$0xff]
  %v84 = vld [vmem:[%s0 + $0x148] sm:$0xff]
  %v85 = vld [vmem:[%s0 + $0x150] sm:$0xff]
  %v86 = vld [vmem:[%s0 + $0x158] sm:$0xff]
  %v87 = vld [vmem:[%s0 + $0x160] sm:$0xff]
  %v88 = vld [vmem:[%s0 + $0x168] sm:$0xff]
  %v89 = vld [vmem:[%s0 + $0x170] sm:$0xff]
  %v90 = vld [vmem:[%s0 + $0x178] sm:$0xff]
  %v91 = vld [vmem:[%s0 + $0x180] sm:$0xff]
  %v92 = vld [vmem:[%s0 + $0x188] sm:$0xff]
  %v93 = vld [vmem:[%s0 + $0x190] sm:$0xff]
  %v94 = vld [vmem:[%s0 + $0x198] sm:$0xff]
  %v95 = vld [vmem:[%s0 + $0x1a0] sm:$0xff]
  %v96 = vld [vmem:[%s0 + $0x1a8] sm:$0xff]
  %v97 = vld [vmem:[%s0 + $0x1b0] sm:$0xff]
  %v98 = vld [vmem:[%s0 + $0x1b8] sm:$0xff]
  %v99 = vld [vmem:[%s0 + $0x1c0] sm:$0xff]
  %v100 = vld [vmem:[%s0 + $0x1c8] sm:$0xff]
  %v101 = vld [vmem:[%s0 + $0x1d0] sm:$0xff]
  %v102 = vld [vmem:[%s0 + $0x1d8] sm:$0xff]
  %v103 = vld [vmem:[%s0 + $0x1e0] sm:$0xff]
  %v104 = vld [vmem:[%s0 + $0x1e8] sm:$0xff]
  %v105 = vld [vmem:[%s0 + $0x1f0] sm:$0xff]
  %v106 = vld [vmem:[%s0 + $0x1f8] sm:$0xff]
  %v107 = vld [vmem:[%s0 + $0x200] sm:$0xff]
  %v108 = vld [vmem:[%s0 + $0x208] sm:$0xff]
  %v109 = vld [vmem:[%s0 + $0x210] sm:$0xff]
  %v110 = vld [vmem:[%s0 + $0x218] sm:$0xff]
  %v111 = vld [vmem:[%s0 + $0x220] sm:$0xff]
  %v112 = vld [vmem:[%s0 + $0x228] sm:$0xff]
  %v113 = vld [vmem:[%s0 + $0x230] sm:$0xff]
  %v114 = vld [vmem:[%s0 + $0x238] sm:$0xff]
  %v115 = vld [vmem:[%s0 + $0x240] sm:$0xff]
  %v116 = vld [vmem:[%s0 + $0x248] sm:$0xff]
  %v117 = vld [vmem:[%s0 + $0x250] sm:$0xff]
  %v118 = vld [vmem:[%s0 + $0x258] sm:$0xff]
  %v119 = vld [vmem:[%s0 + $0x260] sm:$0xff]
  %v120 = vld [vmem:[%s0 + $0x268] sm:$0xff]
  %v121 = vld [vmem:[%s0 + $0x270] sm:$0xff]
  %v122 = vld [vmem:[%s0 + $0x278] sm:$0xff]
  %v123 = vld [vmem:[%s0 + $0x280] sm:$0xff]
  %v124 = vld [vmem:[%s0 + $0x288] sm:$0xff]
  %v125 = vld [vmem:[%s0 + $0x290] sm:$0xff]
  %v126 = vld [vmem:[%s0 + $0x298] sm:$0xff]
  %v127 = vld [vmem:[%s0 + $0x2a0] sm:$0xff]
  %v128 = vld [vmem:[%s0 + $0x2a8] sm:$0xff]
  %v129 = vld [vmem:[%s0 + $0x2b0] sm:$0xff]
  %v130 = vld [vmem:[%s0 + $0x2b8] sm:$0xff]
  %v131 = vld [vmem:[%s0 + $0x2c0] sm:$0xff]
  %v132 = vld [vmem:[%s0 + $0x2c8] sm:$0xff]
  %v133 = vld [vmem:[%s0 + $0x2d0] sm:$0xff]
  %v134 = vld [vmem:[%s0 + $0x2d8] sm:$0xff]
  %v135 = vld [vmem:[%s0 + $0x2e0] sm:$0xff]
  %v136 = vld [vmem:[%s0 + $0x2e8] sm:$0xff]
  %v137 = vld [vmem:[%s0 + $0x2f0] sm:$0xff]
  %v138 = vld [vmem:[%s0 + $0x2f8] sm:$0xff]
  %v139 = vld [vmem:[%s0 + $0x300] sm:$0xff]
  %v140 = vld [vmem:[%s0 + $0x308] sm:$0xff]
  %v141 = vld [vmem:[%s0 + $0x310] sm:$0xff]
  %v142 = vld [vmem:[%s0 + $0x318] sm:$0xff]
  %v143 = vld [vmem:[%s0 + $0x320] sm:$0xff]
  %v144 = vld [vmem:[%s0 + $0x328] sm:$0xff]
  %v145 = vld [vmem:[%s0 + $0x330] sm:$0xff]
  %v146 = vld [vmem:[%s0 + $0x338] sm:$0xff]
  %v147 = vld [vmem:[%s0 + $0x340] sm:$0xff]
  %v148 = vld [vmem:[%s0 + $0x348] sm:$0xff]
  %v149 = vld [vmem:[%s0 + $0x350] sm:$0xff]
  %v150 = vld [vmem:[%s0 + $0x358] sm:$0xff]
  %v151 = vld [vmem:[%s0 + $0x360] sm:$0xff]
  %v152 = vld [vmem:[%s0 + $0x368] sm:$0xff]
  %v153 = vld [vmem:[%s0 + $0x370] sm:$0xff]
  %v154 = vld [vmem:[%s0 + $0x378] sm:$0xff]
  %v155 = vld [vmem:[%s0 + $0x380] sm:$0xff]
  %v156 = vld [vmem:[%s0 + $0x388] sm:$0xff]
  %v157 = vld [vmem:[%s0 + $0x390] sm:$0xff]
  %v158 = vld [vmem:[%s0 + $0x398] sm:$0xff]
  %v159 = vld [vmem:[%s0 + $0x3a0] sm:$0xff]
  %v160 = vld [vmem:[%s0 + $0x3a8] sm:$0xff]
  %v161 = vld [vmem:[%s0 + $0x3b0] sm:$0xff]
  %v162 = vld [vmem:[%s0 + $0x3b8] sm:$0xff]
  %v163 = vld [vmem:[%s0 + $0x3c0] sm:$0xff]
  %v164 = vld [vmem:[%s0 + $0x3c8] sm:$0xff]
  %v165 = vld [vmem:[%s0 + $0x3d0] sm:$0xff]
  %v166 = vld [vmem:[%s0 + $0x3d8] sm:$0xff]
  %v167 = vld [vmem:[%s0 + $0x3e0] sm:$0xff]
  %v168 = vld [vmem:[%s0 + $0x3e8] sm:$0xff]
  %v169 = vld [vmem:[%s0 + $0x3f0] sm:$0xff]
  %v170 = vld [vmem:[%s0 + $0x3f8] sm:$0xff]
  %v172 = vlaneseq
  %v173 = vshrl.u32 %v172, 7
  %v174 = vsub.s32 0, %v173
  %v175 = vrot.slane %v28, %v174
  %vm177 = vcmask 523264
  %v179 = vsel %vm177, %v43, 0
  %v182 = vsel %vm177, %v44, 0
  %v185 = vsel %vm177, %v45, 0
  %v188 = vsel %vm177, %v46, 0
  %v191 = vsel %vm177, %v47, 0
  %v194 = vsel %vm177, %v48, 0
  %v197 = vsel %vm177, %v49, 0
  %v200 = vsel %vm177, %v50, 0
  %v203 = vsel %vm177, %v51, 0
  %v206 = vsel %vm177, %v52, 0
  %v209 = vsel %vm177, %v53, 0
  %v212 = vsel %vm177, %v54, 0
  %v215 = vsel %vm177, %v55, 0
  %v218 = vsel %vm177, %v56, 0
  %v221 = vsel %vm177, %v57, 0
  %v224 = vsel %vm177, %v58, 0
  %v227 = vsel %vm177, %v59, 0
  %v230 = vsel %vm177, %v60, 0
  %v233 = vsel %vm177, %v61, 0
  %v236 = vsel %vm177, %v62, 0
  %v239 = vsel %vm177, %v63, 0
  %v242 = vsel %vm177, %v64, 0
  %v245 = vsel %vm177, %v65, 0
  %v248 = vsel %vm177, %v66, 0
  %v251 = vsel %vm177, %v67, 0
  %v254 = vsel %vm177, %v68, 0
  %v257 = vsel %vm177, %v69, 0
  %v260 = vsel %vm177, %v70, 0
  %v263 = vsel %vm177, %v71, 0
  %v266 = vsel %vm177, %v72, 0
  %v269 = vsel %vm177, %v73, 0
  %v272 = vsel %vm177, %v74, 0
  %v275 = vsel %vm177, %v75, 0
  %v278 = vsel %vm177, %v76, 0
  %v281 = vsel %vm177, %v77, 0
  %v284 = vsel %vm177, %v78, 0
  %v287 = vsel %vm177, %v79, 0
  %v290 = vsel %vm177, %v80, 0
  %v293 = vsel %vm177, %v81, 0
  %v296 = vsel %vm177, %v82, 0
  %v299 = vsel %vm177, %v83, 0
  %v302 = vsel %vm177, %v84, 0
  %v305 = vsel %vm177, %v85, 0
  %v308 = vsel %vm177, %v86, 0
  %v311 = vsel %vm177, %v87, 0
  %v314 = vsel %vm177, %v88, 0
  %v317 = vsel %vm177, %v89, 0
  %v320 = vsel %vm177, %v90, 0
  %v323 = vsel %vm177, %v91, 0
  %v326 = vsel %vm177, %v92, 0
  %v329 = vsel %vm177, %v93, 0
  %v332 = vsel %vm177, %v94, 0
  %v335 = vsel %vm177, %v95, 0
  %v338 = vsel %vm177, %v96, 0
  %v341 = vsel %vm177, %v97, 0
  %v344 = vsel %vm177, %v98, 0
  %v347 = vsel %vm177, %v99, 0
  %v350 = vsel %vm177, %v100, 0
  %v353 = vsel %vm177, %v101, 0
  %v356 = vsel %vm177, %v102, 0
  %v359 = vsel %vm177, %v103, 0
  %v362 = vsel %vm177, %v104, 0
  %v365 = vsel %vm177, %v105, 0
  %v368 = vsel %vm177, %v106, 0
  %v371 = vsel %vm177, %v107, 0
  %v374 = vsel %vm177, %v108, 0
  %v377 = vsel %vm177, %v109, 0
  %v380 = vsel %vm177, %v110, 0
  %v383 = vsel %vm177, %v111, 0
  %v386 = vsel %vm177, %v112, 0
  %v389 = vsel %vm177, %v113, 0
  %v392 = vsel %vm177, %v114, 0
  %v395 = vsel %vm177, %v115, 0
  %v398 = vsel %vm177, %v116, 0
  %v401 = vsel %vm177, %v117, 0
  %v404 = vsel %vm177, %v118, 0
  %v407 = vsel %vm177, %v119, 0
  %v410 = vsel %vm177, %v120, 0
  %v413 = vsel %vm177, %v121, 0
  %v416 = vsel %vm177, %v122, 0
  %v419 = vsel %vm177, %v123, 0
  %v422 = vsel %vm177, %v124, 0
  %v425 = vsel %vm177, %v125, 0
  %v428 = vsel %vm177, %v126, 0
  %v431 = vsel %vm177, %v127, 0
  %v434 = vsel %vm177, %v128, 0
  %v437 = vsel %vm177, %v129, 0
  %v440 = vsel %vm177, %v130, 0
  %v443 = vsel %vm177, %v131, 0
  %v446 = vsel %vm177, %v132, 0
  %v449 = vsel %vm177, %v133, 0
  %v452 = vsel %vm177, %v134, 0
  %v455 = vsel %vm177, %v135, 0
  %v458 = vsel %vm177, %v136, 0
  %v461 = vsel %vm177, %v137, 0
  %v464 = vsel %vm177, %v138, 0
  %v467 = vsel %vm177, %v139, 0
  %v470 = vsel %vm177, %v140, 0
  %v473 = vsel %vm177, %v141, 0
  %v476 = vsel %vm177, %v142, 0
  %v479 = vsel %vm177, %v143, 0
  %v482 = vsel %vm177, %v144, 0
  %v485 = vsel %vm177, %v145, 0
  %v488 = vsel %vm177, %v146, 0
  %v491 = vsel %vm177, %v147, 0
  %v494 = vsel %vm177, %v148, 0
  %v497 = vsel %vm177, %v149, 0
  %v500 = vsel %vm177, %v150, 0
  %v503 = vsel %vm177, %v151, 0
  %v506 = vsel %vm177, %v152, 0
  %v509 = vsel %vm177, %v153, 0
  %v512 = vsel %vm177, %v154, 0
  %v515 = vsel %vm177, %v155, 0
  %v518 = vsel %vm177, %v156, 0
  %v521 = vsel %vm177, %v157, 0
  %v524 = vsel %vm177, %v158, 0
  %v527 = vsel %vm177, %v159, 0
  %v530 = vsel %vm177, %v160, 0
  %v533 = vsel %vm177, %v161, 0
  %v536 = vsel %vm177, %v162, 0
  %v539 = vsel %vm177, %v163, 0
  %v542 = vsel %vm177, %v164, 0
  %v545 = vsel %vm177, %v165, 0
  %v548 = vsel %vm177, %v166, 0
  %v551 = vsel %vm177, %v167, 0
  %v554 = vsel %vm177, %v168, 0
  %v557 = vsel %vm177, %v169, 0
  %v560 = vsel %vm177, %v170, 0
  %562 = vmatprep.subr.mxu0 0.0
  %563 = vmatpush1.msra.mxu0 %v20
  %564 = vmatprep.subr.mxu0 0.0
  %565 = vmatpush1.msra.mxu0 %v21
  %566 = vmatprep.subr.mxu0 0.0
  %567 = vmatpush1.msra.mxu0 %v22
  %568 = vmatprep.subr.mxu0 0.0
  %569 = vmatpush1.msra.mxu0 %v23
  %570 = vmatprep.subr.mxu0 0.0
  %571 = vmatpush1.msra.mxu0 %v24
  %572 = vmatprep.subr.mxu0 0.0
  %573 = vmatpush1.msra.mxu0 %v25
  %574 = vmatprep.subr.mxu0 0.0
  %575 = vmatpush1.msra.mxu0 %v26
  %576 = vmatprep.subr.mxu0 0.0
  %577 = vmatpush1.msra.mxu0 %v27
  %578 = vmatprep.subr.mxu0 0.0
  %579 = vmatpush1.msra.mxu0 0.0
  %580 = vmatprep.subr.mxu0 0.0
  %581 = vmatpush1.msra.mxu0 0.0
  %582 = vmatprep.subr.mxu0 0.0
  %583 = vmatpush1.msra.mxu0 0.0
  %584 = vmatprep.subr.mxu0 0.0
  %585 = vmatpush1.msra.mxu0 0.0
  %586 = vmatprep.subr.mxu0 0.0
  %587 = vmatpush1.msra.mxu0 0.0
  %588 = vmatprep.subr.mxu0 0.0
  %589 = vmatpush1.msra.mxu0 0.0
  %590 = vmatprep.subr.mxu0 0.0
  %591 = vmatpush1.msra.mxu0 0.0
  %592 = vmatprep.subr.mxu0 0.0
  %593 = vmatpush1.msra.mxu0 0.0
  %594 = vmatprep.subr.mxu0 0.0
  %595 = vmatpush1.msra.mxu0 0.0
  %596 = vmatprep.subr.mxu0 0.0
  %597 = vmatpush1.msra.mxu0 0.0
  %598 = vmatprep.subr.mxu0 0.0
  %599 = vmatpush1.msra.mxu0 0.0
  %600 = vmatprep.subr.mxu0 0.0
  %601 = vmatpush1.msra.mxu0 0.0
  %602 = vmatprep.subr.mxu0 0.0
  %603 = vmatpush1.msra.mxu0 0.0
  %604 = vmatprep.subr.mxu0 0.0
  %605 = vmatpush1.msra.mxu0 0.0
  %606 = vmatprep.subr.mxu0 0.0
  %607 = vmatpush1.msra.mxu0 0.0
  %608 = vmatprep.subr.mxu0 0.0
  %609 = vmatpush1.msra.mxu0 0.0
  %610 = vmatprep.subr.mxu0 0.0
  %611 = vmatpush1.msra.mxu0 0.0
  %612 = vmatprep.subr.mxu0 0.0
  %613 = vmatpush1.msra.mxu0 0.0
  %614 = vmatprep.subr.mxu0 0.0
  %615 = vmatpush1.msra.mxu0 0.0
  %616 = vmatprep.subr.mxu0 0.0
  %617 = vmatpush1.msra.mxu0 0.0
  %618 = vmatprep.subr.mxu0 0.0
  %619 = vmatpush1.msra.mxu0 0.0
  %620 = vmatprep.subr.mxu0 0.0
  %621 = vmatpush1.msra.mxu0 0.0
  %622 = vmatprep.subr.mxu0 0.0
  %623 = vmatpush1.msra.mxu0 0.0
  %624 = vmatprep.subr.mxu0 0.0
  %625 = vmatpush1.msra.mxu0 0.0
  %626 = vmatprep.mubr.f32.mxu0 0.0
  %627 = vmatmul.mubr.f32.gmra.mrb[0].mxu0 %v179
  %v628 = vpop.f32.mrb[0].mxu0
  %v629 = vadd.f32 %v175, %v628
  %v630 = vpop.f32.mrb[0].mxu0
  %631 = vmatprep.mubr.f32.mxu0 0.0
  %632 = vmatmul.mubr.f32.gmra.mrb[0].mxu0 %v182
  %v633 = vpop.f32.mrb[0].mxu0
  %v634 = vadd.f32 %v175, %v633
  %v635 = vpop.f32.mrb[0].mxu0
  %636 = vmatprep.mubr.f32.mxu0 0.0
  %637 = vmatmul.mubr.f32.gmra.mrb[0].mxu0 %v185
  %v638 = vpop.f32.mrb[0].mxu0
  %v639 = vadd.f32 %v175, %v638
  %v640 = vpop.f32.mrb[0].mxu0
  %641 = vmatprep.mubr.f32.mxu0 0.0
  %642 = vmatmul.mubr.f32.gmra.mrb[0].mxu0 %v188
  %v643 = vpop.f32.mrb[0].mxu0
  %v644 = vadd.f32 %v175, %v643
  %v645 = vpop.f32.mrb[0].mxu0
  %646 = vmatprep.mubr.f32.mxu0 0.0
  %647 = vmatmul.mubr.f32.gmra.mrb[0].mxu0 %v191
  %v648 = vpop.f32.mrb[0].mxu0
  %v649 = vadd.f32 %v175, %v648
  %v650 = vpop.f32.mrb[0].mxu0
  %651 = vmatprep.mubr.f32.mxu0 0.0
  %652 = vmatmul.mubr.f32.gmra.mrb[0].mxu0 %v194
  %v653 = vpop.f32.mrb[0].mxu0
  %v654 = vadd.f32 %v175, %v653
  %v655 = vpop.f32.mrb[0].mxu0
  %656 = vmatprep.mubr.f32.mxu0 0.0
  %657 = vmatmul.mubr.f32.gmra.mrb[0].mxu0 %v197
  %v658 = vpop.f32.mrb[0].mxu0
  %v659 = vadd.f32 %v175, %v658
  %v660 = vpop.f32.mrb[0].mxu0
  %661 = vmatprep.mubr.f32.mxu0 0.0
  %662 = vmatmul.mubr.f32.gmra.mrb[0].mxu0 %v200
  %v663 = vpop.f32.mrb[0].mxu0
  %v664 = vadd.f32 %v175, %v663
  %v665 = vpop.f32.mrb[0].mxu0
  %666 = vmatprep.mubr.f32.mxu0 0.0
  %667 = vmatmul.mubr.f32.gmra.mrb[0].mxu0 %v203
  %v668 = vpop.f32.mrb[0].mxu0
  %v669 = vadd.f32 %v175, %v668
  %v670 = vpop.f32.mrb[0].mxu0
  %671 = vmatprep.mubr.f32.mxu0 0.0
  %672 = vmatmul.mubr.f32.gmra.mrb[0].mxu0 %v206
  %v673 = vpop.f32.mrb[0].mxu0
  %v674 = vadd.f32 %v175, %v673
  %v675 = vpop.f32.mrb[0].mxu0
  %676 = vmatprep.mubr.f32.mxu0 0.0
  %677 = vmatmul.mubr.f32.gmra.mrb[0].mxu0 %v209
  %v678 = vpop.f32.mrb[0].mxu0
  %v679 = vadd.f32 %v175, %v678
  %v680 = vpop.f32.mrb[0].mxu0
  %681 = vmatprep.mubr.f32.mxu0 0.0
  %682 = vmatmul.mubr.f32.gmra.mrb[0].mxu0 %v212
  %v683 = vpop.f32.mrb[0].mxu0
  %v684 = vadd.f32 %v175, %v683
  %v685 = vpop.f32.mrb[0].mxu0
  %686 = vmatprep.mubr.f32.mxu0 0.0
  %687 = vmatmul.mubr.f32.gmra.mrb[0].mxu0 %v215
  %v688 = vpop.f32.mrb[0].mxu0
  %v689 = vadd.f32 %v175, %v688
  %v690 = vpop.f32.mrb[0].mxu0
  %691 = vmatprep.mubr.f32.mxu0 0.0
  %692 = vmatmul.mubr.f32.gmra.mrb[0].mxu0 %v218
  %v693 = vpop.f32.mrb[0].mxu0
  %v694 = vadd.f32 %v175, %v693
  %v695 = vpop.f32.mrb[0].mxu0
  %696 = vmatprep.mubr.f32.mxu0 0.0
  %697 = vmatmul.mubr.f32.gmra.mrb[0].mxu0 %v221
  %v698 = vpop.f32.mrb[0].mxu0
  %v699 = vadd.f32 %v175, %v698
  %v700 = vpop.f32.mrb[0].mxu0
  %701 = vmatprep.mubr.f32.mxu0 0.0
  %702 = vmatmul.mubr.f32.gmra.mrb[0].mxu0 %v224
  %v703 = vpop.f32.mrb[0].mxu0
  %v704 = vadd.f32 %v175, %v703
  %v705 = vpop.f32.mrb[0].mxu0
  %706 = vmatprep.mubr.f32.mxu0 0.0
  %707 = vmatmul.mubr.f32.gmra.mrb[0].mxu0 %v227
  %v708 = vpop.f32.mrb[0].mxu0
  %v709 = vadd.f32 %v175, %v708
  %v710 = vpop.f32.mrb[0].mxu0
  %711 = vmatprep.mubr.f32.mxu0 0.0
  %712 = vmatmul.mubr.f32.gmra.mrb[0].mxu0 %v230
  %v713 = vpop.f32.mrb[0].mxu0
  %v714 = vadd.f32 %v175, %v713
  %v715 = vpop.f32.mrb[0].mxu0
  %716 = vmatprep.mubr.f32.mxu0 0.0
  %717 = vmatmul.mubr.f32.gmra.mrb[0].mxu0 %v233
  %v718 = vpop.f32.mrb[0].mxu0
  %v719 = vadd.f32 %v175, %v718
  %v720 = vpop.f32.mrb[0].mxu0
  %721 = vmatprep.mubr.f32.mxu0 0.0
  %722 = vmatmul.mubr.f32.gmra.mrb[0].mxu0 %v236
  %v723 = vpop.f32.mrb[0].mxu0
  %v724 = vadd.f32 %v175, %v723
  %v725 = vpop.f32.mrb[0].mxu0
  %726 = vmatprep.mubr.f32.mxu0 0.0
  %727 = vmatmul.mubr.f32.gmra.mrb[0].mxu0 %v239
  %v728 = vpop.f32.mrb[0].mxu0
  %v729 = vadd.f32 %v175, %v728
  %v730 = vpop.f32.mrb[0].mxu0
  %731 = vmatprep.mubr.f32.mxu0 0.0
  %732 = vmatmul.mubr.f32.gmra.mrb[0].mxu0 %v242
  %v733 = vpop.f32.mrb[0].mxu0
  %v734 = vadd.f32 %v175, %v733
  %v735 = vpop.f32.mrb[0].mxu0
  %736 = vmatprep.mubr.f32.mxu0 0.0
  %737 = vmatmul.mubr.f32.gmra.mrb[0].mxu0 %v245
  %v738 = vpop.f32.mrb[0].mxu0
  %v739 = vadd.f32 %v175, %v738
  %v740 = vpop.f32.mrb[0].mxu0
  %741 = vmatprep.mubr.f32.mxu0 0.0
  %742 = vmatmul.mubr.f32.gmra.mrb[0].mxu0 %v248
  %v743 = vpop.f32.mrb[0].mxu0
  %v744 = vadd.f32 %v175, %v743
  %v745 = vpop.f32.mrb[0].mxu0
  %746 = vmatprep.mubr.f32.mxu0 0.0
  %747 = vmatmul.mubr.f32.gmra.mrb[0].mxu0 %v251
  %v748 = vpop.f32.mrb[0].mxu0
  %v749 = vadd.f32 %v175, %v748
  %v750 = vpop.f32.mrb[0].mxu0
  %751 = vmatprep.mubr.f32.mxu0 0.0
  %752 = vmatmul.mubr.f32.gmra.mrb[0].mxu0 %v254
  %v753 = vpop.f32.mrb[0].mxu0
  %v754 = vadd.f32 %v175, %v753
  %v755 = vpop.f32.mrb[0].mxu0
  %756 = vmatprep.mubr.f32.mxu0 0.0
  %757 = vmatmul.mubr.f32.gmra.mrb[0].mxu0 %v257
  %v758 = vpop.f32.mrb[0].mxu0
  %v759 = vadd.f32 %v175, %v758
  %v760 = vpop.f32.mrb[0].mxu0
  %761 = vmatprep.mubr.f32.mxu0 0.0
  %762 = vmatmul.mubr.f32.gmra.mrb[0].mxu0 %v260
  %v763 = vpop.f32.mrb[0].mxu0
  %v764 = vadd.f32 %v175, %v763
  %v765 = vpop.f32.mrb[0].mxu0
  %766 = vmatprep.mubr.f32.mxu0 0.0
  %767 = vmatmul.mubr.f32.gmra.mrb[0].mxu0 %v263
  %v768 = vpop.f32.mrb[0].mxu0
  %v769 = vadd.f32 %v175, %v768
  %v770 = vpop.f32.mrb[0].mxu0
  %771 = vmatprep.mubr.f32.mxu0 0.0
  %772 = vmatmul.mubr.f32.gmra.mrb[0].mxu0 %v266
  %v773 = vpop.f32.mrb[0].mxu0
  %v774 = vadd.f32 %v175, %v773
  %v775 = vpop.f32.mrb[0].mxu0
  %776 = vmatprep.mubr.f32.mxu0 0.0
  %777 = vmatmul.mubr.f32.gmra.mrb[0].mxu0 %v269
  %v778 = vpop.f32.mrb[0].mxu0
  %v779 = vadd.f32 %v175, %v778
  %v780 = vpop.f32.mrb[0].mxu0
  %781 = vmatprep.mubr.f32.mxu0 0.0
  %782 = vmatmul.mubr.f32.gmra.mrb[0].mxu0 %v272
  %v783 = vpop.f32.mrb[0].mxu0
  %v784 = vadd.f32 %v175, %v783
  %v785 = vpop.f32.mrb[0].mxu0
  %786 = vmatprep.mubr.f32.mxu0 0.0
  %787 = vmatmul.mubr.f32.gmra.mrb[0].mxu0 %v275
  %v788 = vpop.f32.mrb[0].mxu0
  %v789 = vadd.f32 %v175, %v788
  %v790 = vpop.f32.mrb[0].mxu0
  %791 = vmatprep.mubr.f32.mxu0 0.0
  %792 = vmatmul.mubr.f32.gmra.mrb[0].mxu0 %v278
  %v793 = vpop.f32.mrb[0].mxu0
  %v794 = vadd.f32 %v175, %v793
  %v795 = vpop.f32.mrb[0].mxu0
  %796 = vmatprep.mubr.f32.mxu0 0.0
  %797 = vmatmul.mubr.f32.gmra.mrb[0].mxu0 %v281
  %v798 = vpop.f32.mrb[0].mxu0
  %v799 = vadd.f32 %v175, %v798
  %v800 = vpop.f32.mrb[0].mxu0
  %801 = vmatprep.mubr.f32.mxu0 0.0
  %802 = vmatmul.mubr.f32.gmra.mrb[0].mxu0 %v284
  %v803 = vpop.f32.mrb[0].mxu0
  %v804 = vadd.f32 %v175, %v803
  %v805 = vpop.f32.mrb[0].mxu0
  %806 = vmatprep.mubr.f32.mxu0 0.0
  %807 = vmatmul.mubr.f32.gmra.mrb[0].mxu0 %v287
  %v808 = vpop.f32.mrb[0].mxu0
  %v809 = vadd.f32 %v175, %v808
  %v810 = vpop.f32.mrb[0].mxu0
  %811 = vmatprep.mubr.f32.mxu0 0.0
  %812 = vmatmul.mubr.f32.gmra.mrb[0].mxu0 %v290
  %v813 = vpop.f32.mrb[0].mxu0
  %v814 = vadd.f32 %v175, %v813
  %v815 = vpop.f32.mrb[0].mxu0
  %816 = vmatprep.mubr.f32.mxu0 0.0
  %817 = vmatmul.mubr.f32.gmra.mrb[0].mxu0 %v293
  %v818 = vpop.f32.mrb[0].mxu0
  %v819 = vadd.f32 %v175, %v818
  %v820 = vpop.f32.mrb[0].mxu0
  %821 = vmatprep.mubr.f32.mxu0 0.0
  %822 = vmatmul.mubr.f32.gmra.mrb[0].mxu0 %v296
  %v823 = vpop.f32.mrb[0].mxu0
  %v824 = vadd.f32 %v175, %v823
  %v825 = vpop.f32.mrb[0].mxu0
  %826 = vmatprep.mubr.f32.mxu0 0.0
  %827 = vmatmul.mubr.f32.gmra.mrb[0].mxu0 %v299
  %v828 = vpop.f32.mrb[0].mxu0
  %v829 = vadd.f32 %v175, %v828
  %v830 = vpop.f32.mrb[0].mxu0
  %831 = vmatprep.mubr.f32.mxu0 0.0
  %832 = vmatmul.mubr.f32.gmra.mrb[0].mxu0 %v302
  %v833 = vpop.f32.mrb[0].mxu0
  %v834 = vadd.f32 %v175, %v833
  %v835 = vpop.f32.mrb[0].mxu0
  %836 = vmatprep.mubr.f32.mxu0 0.0
  %837 = vmatmul.mubr.f32.gmra.mrb[0].mxu0 %v305
  %v838 = vpop.f32.mrb[0].mxu0
  %v839 = vadd.f32 %v175, %v838
  %v840 = vpop.f32.mrb[0].mxu0
  %841 = vmatprep.mubr.f32.mxu0 0.0
  %842 = vmatmul.mubr.f32.gmra.mrb[0].mxu0 %v308
  %v843 = vpop.f32.mrb[0].mxu0
  %v844 = vadd.f32 %v175, %v843
  %v845 = vpop.f32.mrb[0].mxu0
  %846 = vmatprep.mubr.f32.mxu0 0.0
  %847 = vmatmul.mubr.f32.gmra.mrb[0].mxu0 %v311
  %v848 = vpop.f32.mrb[0].mxu0
  %v849 = vadd.f32 %v175, %v848
  %v850 = vpop.f32.mrb[0].mxu0
  %851 = vmatprep.mubr.f32.mxu0 0.0
  %852 = vmatmul.mubr.f32.gmra.mrb[0].mxu0 %v314
  %v853 = vpop.f32.mrb[0].mxu0
  %v854 = vadd.f32 %v175, %v853
  %v855 = vpop.f32.mrb[0].mxu0
  %856 = vmatprep.mubr.f32.mxu0 0.0
  %857 = vmatmul.mubr.f32.gmra.mrb[0].mxu0 %v317
  %v858 = vpop.f32.mrb[0].mxu0
  %v859 = vadd.f32 %v175, %v858
  %v860 = vpop.f32.mrb[0].mxu0
  %861 = vmatprep.mubr.f32.mxu0 0.0
  %862 = vmatmul.mubr.f32.gmra.mrb[0].mxu0 %v320
  %v863 = vpop.f32.mrb[0].mxu0
  %v864 = vadd.f32 %v175, %v863
  %v865 = vpop.f32.mrb[0].mxu0
  %866 = vmatprep.mubr.f32.mxu0 0.0
  %867 = vmatmul.mubr.f32.gmra.mrb[0].mxu0 %v323
  %v868 = vpop.f32.mrb[0].mxu0
  %v869 = vadd.f32 %v175, %v868
  %v870 = vpop.f32.mrb[0].mxu0
  %871 = vmatprep.mubr.f32.mxu0 0.0
  %872 = vmatmul.mubr.f32.gmra.mrb[0].mxu0 %v326
  %v873 = vpop.f32.mrb[0].mxu0
  %v874 = vadd.f32 %v175, %v873
  %v875 = vpop.f32.mrb[0].mxu0
  %876 = vmatprep.mubr.f32.mxu0 0.0
  %877 = vmatmul.mubr.f32.gmra.mrb[0].mxu0 %v329
  %v878 = vpop.f32.mrb[0].mxu0
  %v879 = vadd.f32 %v175, %v878
  %v880 = vpop.f32.mrb[0].mxu0
  %881 = vmatprep.mubr.f32.mxu0 0.0
  %882 = vmatmul.mubr.f32.gmra.mrb[0].mxu0 %v332
  %v883 = vpop.f32.mrb[0].mxu0
  %v884 = vadd.f32 %v175, %v883
  %v885 = vpop.f32.mrb[0].mxu0
  %886 = vmatprep.mubr.f32.mxu0 0.0
  %887 = vmatmul.mubr.f32.gmra.mrb[0].mxu0 %v335
  %v888 = vpop.f32.mrb[0].mxu0
  %v889 = vadd.f32 %v175, %v888
  %v890 = vpop.f32.mrb[0].mxu0
  %891 = vmatprep.mubr.f32.mxu0 0.0
  %892 = vmatmul.mubr.f32.gmra.mrb[0].mxu0 %v338
  %v893 = vpop.f32.mrb[0].mxu0
  %v894 = vadd.f32 %v175, %v893
  %v895 = vpop.f32.mrb[0].mxu0
  %896 = vmatprep.mubr.f32.mxu0 0.0
  %897 = vmatmul.mubr.f32.gmra.mrb[0].mxu0 %v341
  %v898 = vpop.f32.mrb[0].mxu0
  %v899 = vadd.f32 %v175, %v898
  %v900 = vpop.f32.mrb[0].mxu0
  %901 = vmatprep.mubr.f32.mxu0 0.0
  %902 = vmatmul.mubr.f32.gmra.mrb[0].mxu0 %v344
  %v903 = vpop.f32.mrb[0].mxu0
  %v904 = vadd.f32 %v175, %v903
  %v905 = vpop.f32.mrb[0].mxu0
  %906 = vmatprep.mubr.f32.mxu0 0.0
  %907 = vmatmul.mubr.f32.gmra.mrb[0].mxu0 %v347
  %v908 = vpop.f32.mrb[0].mxu0
  %v909 = vadd.f32 %v175, %v908
  %v910 = vpop.f32.mrb[0].mxu0
  %911 = vmatprep.mubr.f32.mxu0 0.0
  %912 = vmatmul.mubr.f32.gmra.mrb[0].mxu0 %v350
  %v913 = vpop.f32.mrb[0].mxu0
  %v914 = vadd.f32 %v175, %v913
  %v915 = vpop.f32.mrb[0].mxu0
  %916 = vmatprep.mubr.f32.mxu0 0.0
  %917 = vmatmul.mubr.f32.gmra.mrb[0].mxu0 %v353
  %v918 = vpop.f32.mrb[0].mxu0
  %v919 = vadd.f32 %v175, %v918
  %v920 = vpop.f32.mrb[0].mxu0
  %921 = vmatprep.mubr.f32.mxu0 0.0
  %922 = vmatmul.mubr.f32.gmra.mrb[0].mxu0 %v356
  %v923 = vpop.f32.mrb[0].mxu0
  %v924 = vadd.f32 %v175, %v923
  %v925 = vpop.f32.mrb[0].mxu0
  %926 = vmatprep.mubr.f32.mxu0 0.0
  %927 = vmatmul.mubr.f32.gmra.mrb[0].mxu0 %v359
  %v928 = vpop.f32.mrb[0].mxu0
  %v929 = vadd.f32 %v175, %v928
  %v930 = vpop.f32.mrb[0].mxu0
  %931 = vmatprep.mubr.f32.mxu0 0.0
  %932 = vmatmul.mubr.f32.gmra.mrb[0].mxu0 %v362
  %v933 = vpop.f32.mrb[0].mxu0
  %v934 = vadd.f32 %v175, %v933
  %v935 = vpop.f32.mrb[0].mxu0
  %936 = vmatprep.mubr.f32.mxu0 0.0
  %937 = vmatmul.mubr.f32.gmra.mrb[0].mxu0 %v365
  %v938 = vpop.f32.mrb[0].mxu0
  %v939 = vadd.f32 %v175, %v938
  %v940 = vpop.f32.mrb[0].mxu0
  %941 = vmatprep.mubr.f32.mxu0 0.0
  %942 = vmatmul.mubr.f32.gmra.mrb[0].mxu0 %v368
  %v943 = vpop.f32.mrb[0].mxu0
  %v944 = vadd.f32 %v175, %v943
  %v945 = vpop.f32.mrb[0].mxu0
  %946 = vmatprep.mubr.f32.mxu0 0.0
  %947 = vmatmul.mubr.f32.gmra.mrb[0].mxu0 %v371
  %v948 = vpop.f32.mrb[0].mxu0
  %v949 = vadd.f32 %v175, %v948
  %v950 = vpop.f32.mrb[0].mxu0
  %951 = vmatprep.mubr.f32.mxu0 0.0
  %952 = vmatmul.mubr.f32.gmra.mrb[0].mxu0 %v374
  %v953 = vpop.f32.mrb[0].mxu0
  %v954 = vadd.f32 %v175, %v953
  %v955 = vpop.f32.mrb[0].mxu0
  %956 = vmatprep.mubr.f32.mxu0 0.0
  %957 = vmatmul.mubr.f32.gmra.mrb[0].mxu0 %v377
  %v958 = vpop.f32.mrb[0].mxu0
  %v959 = vadd.f32 %v175, %v958
  %v960 = vpop.f32.mrb[0].mxu0
  %961 = vmatprep.mubr.f32.mxu0 0.0
  %962 = vmatmul.mubr.f32.gmra.mrb[0].mxu0 %v380
  %v963 = vpop.f32.mrb[0].mxu0
  %v964 = vadd.f32 %v175, %v963
  %v965 = vpop.f32.mrb[0].mxu0
  %966 = vmatprep.mubr.f32.mxu0 0.0
  %967 = vmatmul.mubr.f32.gmra.mrb[0].mxu0 %v383
  %v968 = vpop.f32.mrb[0].mxu0
  %v969 = vadd.f32 %v175, %v968
  %v970 = vpop.f32.mrb[0].mxu0
  %971 = vmatprep.mubr.f32.mxu0 0.0
  %972 = vmatmul.mubr.f32.gmra.mrb[0].mxu0 %v386
  %v973 = vpop.f32.mrb[0].mxu0
  %v974 = vadd.f32 %v175, %v973
  %v975 = vpop.f32.mrb[0].mxu0
  %976 = vmatprep.mubr.f32.mxu0 0.0
  %977 = vmatmul.mubr.f32.gmra.mrb[0].mxu0 %v389
  %v978 = vpop.f32.mrb[0].mxu0
  %v979 = vadd.f32 %v175, %v978
  %v980 = vpop.f32.mrb[0].mxu0
  %981 = vmatprep.mubr.f32.mxu0 0.0
  %982 = vmatmul.mubr.f32.gmra.mrb[0].mxu0 %v392
  %v983 = vpop.f32.mrb[0].mxu0
  %v984 = vadd.f32 %v175, %v983
  %v985 = vpop.f32.mrb[0].mxu0
  %986 = vmatprep.mubr.f32.mxu0 0.0
  %987 = vmatmul.mubr.f32.gmra.mrb[0].mxu0 %v395
  %v988 = vpop.f32.mrb[0].mxu0
  %v989 = vadd.f32 %v175, %v988
  %v990 = vpop.f32.mrb[0].mxu0
  %991 = vmatprep.mubr.f32.mxu0 0.0
  %992 = vmatmul.mubr.f32.gmra.mrb[0].mxu0 %v398
  %v993 = vpop.f32.mrb[0].mxu0
  %v994 = vadd.f32 %v175, %v993
  %v995 = vpop.f32.mrb[0].mxu0
  %996 = vmatprep.mubr.f32.mxu0 0.0
  %997 = vmatmul.mubr.f32.gmra.mrb[0].mxu0 %v401
  %v998 = vpop.f32.mrb[0].mxu0
  %v999 = vadd.f32 %v175, %v998
  %v1000 = vpop.f32.mrb[0].mxu0
  %1001 = vmatprep.mubr.f32.mxu0 0.0
  %1002 = vmatmul.mubr.f32.gmra.mrb[0].mxu0 %v404
  %v1003 = vpop.f32.mrb[0].mxu0
  %v1004 = vadd.f32 %v175, %v1003
  %v1005 = vpop.f32.mrb[0].mxu0
  %1006 = vmatprep.mubr.f32.mxu0 0.0
  %1007 = vmatmul.mubr.f32.gmra.mrb[0].mxu0 %v407
  %v1008 = vpop.f32.mrb[0].mxu0
  %v1009 = vadd.f32 %v175, %v1008
  %v1010 = vpop.f32.mrb[0].mxu0
  %1011 = vmatprep.mubr.f32.mxu0 0.0
  %1012 = vmatmul.mubr.f32.gmra.mrb[0].mxu0 %v410
  %v1013 = vpop.f32.mrb[0].mxu0
  %v1014 = vadd.f32 %v175, %v1013
  %v1015 = vpop.f32.mrb[0].mxu0
  %1016 = vmatprep.mubr.f32.mxu0 0.0
  %1017 = vmatmul.mubr.f32.gmra.mrb[0].mxu0 %v413
  %v1018 = vpop.f32.mrb[0].mxu0
  %v1019 = vadd.f32 %v175, %v1018
  %v1020 = vpop.f32.mrb[0].mxu0
  %1021 = vmatprep.mubr.f32.mxu0 0.0
  %1022 = vmatmul.mubr.f32.gmra.mrb[0].mxu0 %v416
  %v1023 = vpop.f32.mrb[0].mxu0
  %v1024 = vadd.f32 %v175, %v1023
  %v1025 = vpop.f32.mrb[0].mxu0
  %1026 = vmatprep.mubr.f32.mxu0 0.0
  %1027 = vmatmul.mubr.f32.gmra.mrb[0].mxu0 %v419
  %v1028 = vpop.f32.mrb[0].mxu0
  %v1029 = vadd.f32 %v175, %v1028
  %v1030 = vpop.f32.mrb[0].mxu0
  %1031 = vmatprep.mubr.f32.mxu0 0.0
  %1032 = vmatmul.mubr.f32.gmra.mrb[0].mxu0 %v422
  %v1033 = vpop.f32.mrb[0].mxu0
  %v1034 = vadd.f32 %v175, %v1033
  %v1035 = vpop.f32.mrb[0].mxu0
  %1036 = vmatprep.mubr.f32.mxu0 0.0
  %1037 = vmatmul.mubr.f32.gmra.mrb[0].mxu0 %v425
  %v1038 = vpop.f32.mrb[0].mxu0
  %v1039 = vadd.f32 %v175, %v1038
  %v1040 = vpop.f32.mrb[0].mxu0
  %1041 = vmatprep.mubr.f32.mxu0 0.0
  %1042 = vmatmul.mubr.f32.gmra.mrb[0].mxu0 %v428
  %v1043 = vpop.f32.mrb[0].mxu0
  %v1044 = vadd.f32 %v175, %v1043
  %v1045 = vpop.f32.mrb[0].mxu0
  %1046 = vmatprep.mubr.f32.mxu0 0.0
  %1047 = vmatmul.mubr.f32.gmra.mrb[0].mxu0 %v431
  %v1048 = vpop.f32.mrb[0].mxu0
  %v1049 = vadd.f32 %v175, %v1048
  %v1050 = vpop.f32.mrb[0].mxu0
  %1051 = vmatprep.mubr.f32.mxu0 0.0
  %1052 = vmatmul.mubr.f32.gmra.mrb[0].mxu0 %v434
  %v1053 = vpop.f32.mrb[0].mxu0
  %v1054 = vadd.f32 %v175, %v1053
  %v1055 = vpop.f32.mrb[0].mxu0
  %1056 = vmatprep.mubr.f32.mxu0 0.0
  %1057 = vmatmul.mubr.f32.gmra.mrb[0].mxu0 %v437
  %v1058 = vpop.f32.mrb[0].mxu0
  %v1059 = vadd.f32 %v175, %v1058
  %v1060 = vpop.f32.mrb[0].mxu0
  %1061 = vmatprep.mubr.f32.mxu0 0.0
  %1062 = vmatmul.mubr.f32.gmra.mrb[0].mxu0 %v440
  %v1063 = vpop.f32.mrb[0].mxu0
  %v1064 = vadd.f32 %v175, %v1063
  %v1065 = vpop.f32.mrb[0].mxu0
  %1066 = vmatprep.mubr.f32.mxu0 0.0
  %1067 = vmatmul.mubr.f32.gmra.mrb[0].mxu0 %v443
  %v1068 = vpop.f32.mrb[0].mxu0
  %v1069 = vadd.f32 %v175, %v1068
  %v1070 = vpop.f32.mrb[0].mxu0
  %1071 = vmatprep.mubr.f32.mxu0 0.0
  %1072 = vmatmul.mubr.f32.gmra.mrb[0].mxu0 %v446
  %v1073 = vpop.f32.mrb[0].mxu0
  %v1074 = vadd.f32 %v175, %v1073
  %v1075 = vpop.f32.mrb[0].mxu0
  %1076 = vmatprep.mubr.f32.mxu0 0.0
  %1077 = vmatmul.mubr.f32.gmra.mrb[0].mxu0 %v449
  %v1078 = vpop.f32.mrb[0].mxu0
  %v1079 = vadd.f32 %v175, %v1078
  %v1080 = vpop.f32.mrb[0].mxu0
  %1081 = vmatprep.mubr.f32.mxu0 0.0
  %1082 = vmatmul.mubr.f32.gmra.mrb[0].mxu0 %v452
  %v1083 = vpop.f32.mrb[0].mxu0
  %v1084 = vadd.f32 %v175, %v1083
  %v1085 = vpop.f32.mrb[0].mxu0
  %1086 = vmatprep.mubr.f32.mxu0 0.0
  %1087 = vmatmul.mubr.f32.gmra.mrb[0].mxu0 %v455
  %v1088 = vpop.f32.mrb[0].mxu0
  %v1089 = vadd.f32 %v175, %v1088
  %v1090 = vpop.f32.mrb[0].mxu0
  %1091 = vmatprep.mubr.f32.mxu0 0.0
  %1092 = vmatmul.mubr.f32.gmra.mrb[0].mxu0 %v458
  %v1093 = vpop.f32.mrb[0].mxu0
  %v1094 = vadd.f32 %v175, %v1093
  %v1095 = vpop.f32.mrb[0].mxu0
  %1096 = vmatprep.mubr.f32.mxu0 0.0
  %1097 = vmatmul.mubr.f32.gmra.mrb[0].mxu0 %v461
  %v1098 = vpop.f32.mrb[0].mxu0
  %v1099 = vadd.f32 %v175, %v1098
  %v1100 = vpop.f32.mrb[0].mxu0
  %1101 = vmatprep.mubr.f32.mxu0 0.0
  %1102 = vmatmul.mubr.f32.gmra.mrb[0].mxu0 %v464
  %v1103 = vpop.f32.mrb[0].mxu0
  %v1104 = vadd.f32 %v175, %v1103
  %v1105 = vpop.f32.mrb[0].mxu0
  %1106 = vmatprep.mubr.f32.mxu0 0.0
  %1107 = vmatmul.mubr.f32.gmra.mrb[0].mxu0 %v467
  %v1108 = vpop.f32.mrb[0].mxu0
  %v1109 = vadd.f32 %v175, %v1108
  %v1110 = vpop.f32.mrb[0].mxu0
  %1111 = vmatprep.mubr.f32.mxu0 0.0
  %1112 = vmatmul.mubr.f32.gmra.mrb[0].mxu0 %v470
  %v1113 = vpop.f32.mrb[0].mxu0
  %v1114 = vadd.f32 %v175, %v1113
  %v1115 = vpop.f32.mrb[0].mxu0
  %1116 = vmatprep.mubr.f32.mxu0 0.0
  %1117 = vmatmul.mubr.f32.gmra.mrb[0].mxu0 %v473
  %v1118 = vpop.f32.mrb[0].mxu0
  %v1119 = vadd.f32 %v175, %v1118
  %v1120 = vpop.f32.mrb[0].mxu0
  %1121 = vmatprep.mubr.f32.mxu0 0.0
  %1122 = vmatmul.mubr.f32.gmra.mrb[0].mxu0 %v476
  %v1123 = vpop.f32.mrb[0].mxu0
  %v1124 = vadd.f32 %v175, %v1123
  %v1125 = vpop.f32.mrb[0].mxu0
  %1126 = vmatprep.mubr.f32.mxu0 0.0
  %1127 = vmatmul.mubr.f32.gmra.mrb[0].mxu0 %v479
  %v1128 = vpop.f32.mrb[0].mxu0
  %v1129 = vadd.f32 %v175, %v1128
  %v1130 = vpop.f32.mrb[0].mxu0
  %1131 = vmatprep.mubr.f32.mxu0 0.0
  %1132 = vmatmul.mubr.f32.gmra.mrb[0].mxu0 %v482
  %v1133 = vpop.f32.mrb[0].mxu0
  %v1134 = vadd.f32 %v175, %v1133
  %v1135 = vpop.f32.mrb[0].mxu0
  %1136 = vmatprep.mubr.f32.mxu0 0.0
  %1137 = vmatmul.mubr.f32.gmra.mrb[0].mxu0 %v485
  %v1138 = vpop.f32.mrb[0].mxu0
  %v1139 = vadd.f32 %v175, %v1138
  %v1140 = vpop.f32.mrb[0].mxu0
  %1141 = vmatprep.mubr.f32.mxu0 0.0
  %1142 = vmatmul.mubr.f32.gmra.mrb[0].mxu0 %v488
  %v1143 = vpop.f32.mrb[0].mxu0
  %v1144 = vadd.f32 %v175, %v1143
  %v1145 = vpop.f32.mrb[0].mxu0
  %1146 = vmatprep.mubr.f32.mxu0 0.0
  %1147 = vmatmul.mubr.f32.gmra.mrb[0].mxu0 %v491
  %v1148 = vpop.f32.mrb[0].mxu0
  %v1149 = vadd.f32 %v175, %v1148
  %v1150 = vpop.f32.mrb[0].mxu0
  %1151 = vmatprep.mubr.f32.mxu0 0.0
  %1152 = vmatmul.mubr.f32.gmra.mrb[0].mxu0 %v494
  %v1153 = vpop.f32.mrb[0].mxu0
  %v1154 = vadd.f32 %v175, %v1153
  %v1155 = vpop.f32.mrb[0].mxu0
  %1156 = vmatprep.mubr.f32.mxu0 0.0
  %1157 = vmatmul.mubr.f32.gmra.mrb[0].mxu0 %v497
  %v1158 = vpop.f32.mrb[0].mxu0
  %v1159 = vadd.f32 %v175, %v1158
  %v1160 = vpop.f32.mrb[0].mxu0
  %1161 = vmatprep.mubr.f32.mxu0 0.0
  %1162 = vmatmul.mubr.f32.gmra.mrb[0].mxu0 %v500
  %v1163 = vpop.f32.mrb[0].mxu0
  %v1164 = vadd.f32 %v175, %v1163
  %v1165 = vpop.f32.mrb[0].mxu0
  %1166 = vmatprep.mubr.f32.mxu0 0.0
  %1167 = vmatmul.mubr.f32.gmra.mrb[0].mxu0 %v503
  %v1168 = vpop.f32.mrb[0].mxu0
  %v1169 = vadd.f32 %v175, %v1168
  %v1170 = vpop.f32.mrb[0].mxu0
  %1171 = vmatprep.mubr.f32.mxu0 0.0
  %1172 = vmatmul.mubr.f32.gmra.mrb[0].mxu0 %v506
  %v1173 = vpop.f32.mrb[0].mxu0
  %v1174 = vadd.f32 %v175, %v1173
  %v1175 = vpop.f32.mrb[0].mxu0
  %1176 = vmatprep.mubr.f32.mxu0 0.0
  %1177 = vmatmul.mubr.f32.gmra.mrb[0].mxu0 %v509
  %v1178 = vpop.f32.mrb[0].mxu0
  %v1179 = vadd.f32 %v175, %v1178
  %v1180 = vpop.f32.mrb[0].mxu0
  %1181 = vmatprep.mubr.f32.mxu0 0.0
  %1182 = vmatmul.mubr.f32.gmra.mrb[0].mxu0 %v512
  %v1183 = vpop.f32.mrb[0].mxu0
  %v1184 = vadd.f32 %v175, %v1183
  %v1185 = vpop.f32.mrb[0].mxu0
  %1186 = vmatprep.mubr.f32.mxu0 0.0
  %1187 = vmatmul.mubr.f32.gmra.mrb[0].mxu0 %v515
  %v1188 = vpop.f32.mrb[0].mxu0
  %v1189 = vadd.f32 %v175, %v1188
  %v1190 = vpop.f32.mrb[0].mxu0
  %1191 = vmatprep.mubr.f32.mxu0 0.0
  %1192 = vmatmul.mubr.f32.gmra.mrb[0].mxu0 %v518
  %v1193 = vpop.f32.mrb[0].mxu0
  %v1194 = vadd.f32 %v175, %v1193
  %v1195 = vpop.f32.mrb[0].mxu0
  %1196 = vmatprep.mubr.f32.mxu0 0.0
  %1197 = vmatmul.mubr.f32.gmra.mrb[0].mxu0 %v521
  %v1198 = vpop.f32.mrb[0].mxu0
  %v1199 = vadd.f32 %v175, %v1198
  %v1200 = vpop.f32.mrb[0].mxu0
  %1201 = vmatprep.mubr.f32.mxu0 0.0
  %1202 = vmatmul.mubr.f32.gmra.mrb[0].mxu0 %v524
  %v1203 = vpop.f32.mrb[0].mxu0
  %v1204 = vadd.f32 %v175, %v1203
  %v1205 = vpop.f32.mrb[0].mxu0
  %1206 = vmatprep.mubr.f32.mxu0 0.0
  %1207 = vmatmul.mubr.f32.gmra.mrb[0].mxu0 %v527
  %v1208 = vpop.f32.mrb[0].mxu0
  %v1209 = vadd.f32 %v175, %v1208
  %v1210 = vpop.f32.mrb[0].mxu0
  %1211 = vmatprep.mubr.f32.mxu0 0.0
  %1212 = vmatmul.mubr.f32.gmra.mrb[0].mxu0 %v530
  %v1213 = vpop.f32.mrb[0].mxu0
  %v1214 = vadd.f32 %v175, %v1213
  %v1215 = vpop.f32.mrb[0].mxu0
  %1216 = vmatprep.mubr.f32.mxu0 0.0
  %1217 = vmatmul.mubr.f32.gmra.mrb[0].mxu0 %v533
  %v1218 = vpop.f32.mrb[0].mxu0
  %v1219 = vadd.f32 %v175, %v1218
  %v1220 = vpop.f32.mrb[0].mxu0
  %1221 = vmatprep.mubr.f32.mxu0 0.0
  %1222 = vmatmul.mubr.f32.gmra.mrb[0].mxu0 %v536
  %v1223 = vpop.f32.mrb[0].mxu0
  %v1224 = vadd.f32 %v175, %v1223
  %v1225 = vpop.f32.mrb[0].mxu0
  %1226 = vmatprep.mubr.f32.mxu0 0.0
  %1227 = vmatmul.mubr.f32.gmra.mrb[0].mxu0 %v539
  %v1228 = vpop.f32.mrb[0].mxu0
  %v1229 = vadd.f32 %v175, %v1228
  %v1230 = vpop.f32.mrb[0].mxu0
  %1231 = vmatprep.mubr.f32.mxu0 0.0
  %1232 = vmatmul.mubr.f32.gmra.mrb[0].mxu0 %v542
  %v1233 = vpop.f32.mrb[0].mxu0
  %v1234 = vadd.f32 %v175, %v1233
  %v1235 = vpop.f32.mrb[0].mxu0
  %1236 = vmatprep.mubr.f32.mxu0 0.0
  %1237 = vmatmul.mubr.f32.gmra.mrb[0].mxu0 %v545
  %v1238 = vpop.f32.mrb[0].mxu0
  %v1239 = vadd.f32 %v175, %v1238
  %v1240 = vpop.f32.mrb[0].mxu0
  %1241 = vmatprep.mubr.f32.mxu0 0.0
  %1242 = vmatmul.mubr.f32.gmra.mrb[0].mxu0 %v548
  %v1243 = vpop.f32.mrb[0].mxu0
  %v1244 = vadd.f32 %v175, %v1243
  %v1245 = vpop.f32.mrb[0].mxu0
  %1246 = vmatprep.mubr.f32.mxu0 0.0
  %1247 = vmatmul.mubr.f32.gmra.mrb[0].mxu0 %v551
  %v1248 = vpop.f32.mrb[0].mxu0
  %v1249 = vadd.f32 %v175, %v1248
  %v1250 = vpop.f32.mrb[0].mxu0
  %1251 = vmatprep.mubr.f32.mxu0 0.0
  %1252 = vmatmul.mubr.f32.gmra.mrb[0].mxu0 %v554
  %v1253 = vpop.f32.mrb[0].mxu0
  %v1254 = vadd.f32 %v175, %v1253
  %v1255 = vpop.f32.mrb[0].mxu0
  %1256 = vmatprep.mubr.f32.mxu0 0.0
  %1257 = vmatmul.mubr.f32.gmra.mrb[0].mxu0 %v557
  %v1258 = vpop.f32.mrb[0].mxu0
  %v1259 = vadd.f32 %v175, %v1258
  %v1260 = vpop.f32.mrb[0].mxu0
  %1261 = vmatprep.mubr.f32.mxu0 0.0
  %1262 = vmatmul.mubr.f32.gmra.mrb[0].mxu0 %v560
  %v1263 = vpop.f32.mrb[0].mxu0
  %v1264 = vadd.f32 %v175, %v1263
  %v1265 = vpop.f32.mrb[0].mxu0
  %1266 = vdwg.mxu0
  %v1267 = vmax.f32 %v629, 0.0
  %v1268 = vmax.f32 %v634, 0.0
  %v1269 = vmax.f32 %v639, 0.0
  %v1270 = vmax.f32 %v644, 0.0
  %v1271 = vmax.f32 %v649, 0.0
  %v1272 = vmax.f32 %v654, 0.0
  %v1273 = vmax.f32 %v659, 0.0
  %v1274 = vmax.f32 %v664, 0.0
  %v1275 = vmax.f32 %v669, 0.0
  %v1276 = vmax.f32 %v674, 0.0
  %v1277 = vmax.f32 %v679, 0.0
  %v1278 = vmax.f32 %v684, 0.0
  %v1279 = vmax.f32 %v689, 0.0
  %v1280 = vmax.f32 %v694, 0.0
  %v1281 = vmax.f32 %v699, 0.0
  %v1282 = vmax.f32 %v704, 0.0
  %v1283 = vmax.f32 %v709, 0.0
  %v1284 = vmax.f32 %v714, 0.0
  %v1285 = vmax.f32 %v719, 0.0
  %v1286 = vmax.f32 %v724, 0.0
  %v1287 = vmax.f32 %v729, 0.0
  %v1288 = vmax.f32 %v734, 0.0
  %v1289 = vmax.f32 %v739, 0.0
  %v1290 = vmax.f32 %v744, 0.0
  %v1291 = vmax.f32 %v749, 0.0
  %v1292 = vmax.f32 %v754, 0.0
  %v1293 = vmax.f32 %v759, 0.0
  %v1294 = vmax.f32 %v764, 0.0
  %v1295 = vmax.f32 %v769, 0.0
  %v1296 = vmax.f32 %v774, 0.0
  %v1297 = vmax.f32 %v779, 0.0
  %v1298 = vmax.f32 %v784, 0.0
  %v1299 = vmax.f32 %v789, 0.0
  %v1300 = vmax.f32 %v794, 0.0
  %v1301 = vmax.f32 %v799, 0.0
  %v1302 = vmax.f32 %v804, 0.0
  %v1303 = vmax.f32 %v809, 0.0
  %v1304 = vmax.f32 %v814, 0.0
  %v1305 = vmax.f32 %v819, 0.0
  %v1306 = vmax.f32 %v824, 0.0
  %v1307 = vmax.f32 %v829, 0.0
  %v1308 = vmax.f32 %v834, 0.0
  %v1309 = vmax.f32 %v839, 0.0
  %v1310 = vmax.f32 %v844, 0.0
  %v1311 = vmax.f32 %v849, 0.0
  %v1312 = vmax.f32 %v854, 0.0
  %v1313 = vmax.f32 %v859, 0.0
  %v1314 = vmax.f32 %v864, 0.0
  %v1315 = vmax.f32 %v869, 0.0
  %v1316 = vmax.f32 %v874, 0.0
  %v1317 = vmax.f32 %v879, 0.0
  %v1318 = vmax.f32 %v884, 0.0
  %v1319 = vmax.f32 %v889, 0.0
  %v1320 = vmax.f32 %v894, 0.0
  %v1321 = vmax.f32 %v899, 0.0
  %v1322 = vmax.f32 %v904, 0.0
  %v1323 = vmax.f32 %v909, 0.0
  %v1324 = vmax.f32 %v914, 0.0
  %v1325 = vmax.f32 %v919, 0.0
  %v1326 = vmax.f32 %v924, 0.0
  %v1327 = vmax.f32 %v929, 0.0
  %v1328 = vmax.f32 %v934, 0.0
  %v1329 = vmax.f32 %v939, 0.0
  %v1330 = vmax.f32 %v944, 0.0
  %v1331 = vmax.f32 %v949, 0.0
  %v1332 = vmax.f32 %v954, 0.0
  %v1333 = vmax.f32 %v959, 0.0
  %v1334 = vmax.f32 %v964, 0.0
  %v1335 = vmax.f32 %v969, 0.0
  %v1336 = vmax.f32 %v974, 0.0
  %v1337 = vmax.f32 %v979, 0.0
  %v1338 = vmax.f32 %v984, 0.0
  %v1339 = vmax.f32 %v989, 0.0
  %v1340 = vmax.f32 %v994, 0.0
  %v1341 = vmax.f32 %v999, 0.0
  %v1342 = vmax.f32 %v1004, 0.0
  %v1343 = vmax.f32 %v1009, 0.0
  %v1344 = vmax.f32 %v1014, 0.0
  %v1345 = vmax.f32 %v1019, 0.0
  %v1346 = vmax.f32 %v1024, 0.0
  %v1347 = vmax.f32 %v1029, 0.0
  %v1348 = vmax.f32 %v1034, 0.0
  %v1349 = vmax.f32 %v1039, 0.0
  %v1350 = vmax.f32 %v1044, 0.0
  %v1351 = vmax.f32 %v1049, 0.0
  %v1352 = vmax.f32 %v1054, 0.0
  %v1353 = vmax.f32 %v1059, 0.0
  %v1354 = vmax.f32 %v1064, 0.0
  %v1355 = vmax.f32 %v1069, 0.0
  %v1356 = vmax.f32 %v1074, 0.0
  %v1357 = vmax.f32 %v1079, 0.0
  %v1358 = vmax.f32 %v1084, 0.0
  %v1359 = vmax.f32 %v1089, 0.0
  %v1360 = vmax.f32 %v1094, 0.0
  %v1361 = vmax.f32 %v1099, 0.0
  %v1362 = vmax.f32 %v1104, 0.0
  %v1363 = vmax.f32 %v1109, 0.0
  %v1364 = vmax.f32 %v1114, 0.0
  %v1365 = vmax.f32 %v1119, 0.0
  %v1366 = vmax.f32 %v1124, 0.0
  %v1367 = vmax.f32 %v1129, 0.0
  %v1368 = vmax.f32 %v1134, 0.0
  %v1369 = vmax.f32 %v1139, 0.0
  %v1370 = vmax.f32 %v1144, 0.0
  %v1371 = vmax.f32 %v1149, 0.0
  %v1372 = vmax.f32 %v1154, 0.0
  %v1373 = vmax.f32 %v1159, 0.0
  %v1374 = vmax.f32 %v1164, 0.0
  %v1375 = vmax.f32 %v1169, 0.0
  %v1376 = vmax.f32 %v1174, 0.0
  %v1377 = vmax.f32 %v1179, 0.0
  %v1378 = vmax.f32 %v1184, 0.0
  %v1379 = vmax.f32 %v1189, 0.0
  %v1380 = vmax.f32 %v1194, 0.0
  %v1381 = vmax.f32 %v1199, 0.0
  %v1382 = vmax.f32 %v1204, 0.0
  %v1383 = vmax.f32 %v1209, 0.0
  %v1384 = vmax.f32 %v1214, 0.0
  %v1385 = vmax.f32 %v1219, 0.0
  %v1386 = vmax.f32 %v1224, 0.0
  %v1387 = vmax.f32 %v1229, 0.0
  %v1388 = vmax.f32 %v1234, 0.0
  %v1389 = vmax.f32 %v1239, 0.0
  %v1390 = vmax.f32 %v1244, 0.0
  %v1391 = vmax.f32 %v1249, 0.0
  %v1392 = vmax.f32 %v1254, 0.0
  %v1393 = vmax.f32 %v1259, 0.0
  %v1394 = vmax.f32 %v1264, 0.0
  %1396 = vset.pattern.permute.xlu0 1
  %1397 = vperm.xlu0 %1396, %v33
  %v1398 = vpop.permute.xlu0 %1397
  %1401 = vset.pattern.permute.xlu0 1
  %1402 = vperm.xlu0 %1401, %v34
  %v1403 = vpop.permute.xlu0 %1402
  %1406 = vset.pattern.permute.xlu0 1
  %1407 = vperm.xlu0 %1406, %v35
  %v1408 = vpop.permute.xlu0 %1407
  %1411 = vset.pattern.permute.xlu0 1
  %1412 = vperm.xlu0 %1411, %v36
  %v1413 = vpop.permute.xlu0 %1412
  %1415 = vmatprep.subr.mxu0 0.0
  %1416 = vmatpush1.xpose.msra.mxu0 %v1267
  %1417 = vmatprep.subr.mxu0 0.0
  %1418 = vmatpush1.xpose.msra.mxu0 %v1268
  %1419 = vmatprep.subr.mxu0 0.0
  %1420 = vmatpush1.xpose.msra.mxu0 %v1269
  %1421 = vmatprep.subr.mxu0 0.0
  %1422 = vmatpush1.xpose.msra.mxu0 %v1270
  %1423 = vmatprep.subr.mxu0 0.0
  %1424 = vmatpush1.xpose.msra.mxu0 %v1271
  %1425 = vmatprep.subr.mxu0 0.0
  %1426 = vmatpush1.xpose.msra.mxu0 %v1272
  %1427 = vmatprep.subr.mxu0 0.0
  %1428 = vmatpush1.xpose.msra.mxu0 %v1273
  %1429 = vmatprep.subr.mxu0 0.0
  %1430 = vmatpush1.xpose.msra.mxu0 %v1274
  %1431 = vmatprep.subr.mxu0 0.0
  %1432 = vmatpush1.xpose.msra.mxu0 %v1275
  %1433 = vmatprep.subr.mxu0 0.0
  %1434 = vmatpush1.xpose.msra.mxu0 %v1276
  %1435 = vmatprep.subr.mxu0 0.0
  %1436 = vmatpush1.xpose.msra.mxu0 %v1277
  %1437 = vmatprep.subr.mxu0 0.0
  %1438 = vmatpush1.xpose.msra.mxu0 %v1278
  %1439 = vmatprep.subr.mxu0 0.0
  %1440 = vmatpush1.xpose.msra.mxu0 %v1279
  %1441 = vmatprep.subr.mxu0 0.0
  %1442 = vmatpush1.xpose.msra.mxu0 %v1280
  %1443 = vmatprep.subr.mxu0 0.0
  %1444 = vmatpush1.xpose.msra.mxu0 %v1281
  %1445 = vmatprep.subr.mxu0 0.0
  %1446 = vmatpush1.xpose.msra.mxu0 %v1282
  %1447 = vmatprep.subr.mxu0 0.0
  %1448 = vmatpush1.xpose.msra.mxu0 %v1283
  %1449 = vmatprep.subr.mxu0 0.0
  %1450 = vmatpush1.xpose.msra.mxu0 %v1284
  %1451 = vmatprep.subr.mxu0 0.0
  %1452 = vmatpush1.xpose.msra.mxu0 %v1285
  %1453 = vmatprep.subr.mxu0 0.0
  %1454 = vmatpush1.xpose.msra.mxu0 %v1286
  %1455 = vmatprep.subr.mxu0 0.0
  %1456 = vmatpush1.xpose.msra.mxu0 %v1287
  %1457 = vmatprep.subr.mxu0 0.0
  %1458 = vmatpush1.xpose.msra.mxu0 %v1288
  %1459 = vmatprep.subr.mxu0 0.0
  %1460 = vmatpush1.xpose.msra.mxu0 %v1289
  %1461 = vmatprep.subr.mxu0 0.0
  %1462 = vmatpush1.xpose.msra.mxu0 %v1290
  %1463 = vmatprep.subr.mxu0 0.0
  %1464 = vmatpush1.xpose.msra.mxu0 %v1291
  %1465 = vmatprep.subr.mxu0 0.0
  %1466 = vmatpush1.xpose.msra.mxu0 %v1292
  %1467 = vmatprep.subr.mxu0 0.0
  %1468 = vmatpush1.xpose.msra.mxu0 %v1293
  %1469 = vmatprep.subr.mxu0 0.0
  %1470 = vmatpush1.xpose.msra.mxu0 %v1294
  %1471 = vmatprep.subr.mxu0 0.0
  %1472 = vmatpush1.xpose.msra.mxu0 %v1295
  %1473 = vmatprep.subr.mxu0 0.0
  %1474 = vmatpush1.xpose.msra.mxu0 %v1296
  %1475 = vmatprep.subr.mxu0 0.0
  %1476 = vmatpush1.xpose.msra.mxu0 %v1297
  %1477 = vmatprep.subr.mxu0 0.0
  %1478 = vmatpush1.xpose.msra.mxu0 %v1298
  %1479 = vmatprep.mubr.f32.mxu0 0.0
  %1480 = vmatmul.mubr.f32.gmra.mrb[0].mxu0 %v29
  %v1481 = vpop.f32.mrb[0].mxu0
  %v1482 = vadd.f32 %v1398, %v1481
  %v1483 = vpop.f32.mrb[0].mxu0
  %v1484 = vadd.f32 %v1398, %v1483
  %1485 = vmatprep.mubr.f32.mxu0 0.0
  %1486 = vmatmul.mubr.f32.gmra.mrb[0].mxu0 %v30
  %v1487 = vpop.f32.mrb[0].mxu0
  %v1488 = vadd.f32 %v1403, %v1487
  %v1489 = vpop.f32.mrb[0].mxu0
  %v1490 = vadd.f32 %v1403, %v1489
  %1491 = vmatprep.mubr.f32.mxu0 0.0
  %1492 = vmatmul.mubr.f32.gmra.mrb[0].mxu0 %v31
  %v1493 = vpop.f32.mrb[0].mxu0
  %v1494 = vadd.f32 %v1408, %v1493
  %v1495 = vpop.f32.mrb[0].mxu0
  %v1496 = vadd.f32 %v1408, %v1495
  %1497 = vmatprep.mubr.f32.mxu0 0.0
  %1498 = vmatmul.mubr.f32.gmra.mrb[0].mxu0 %v32
  %v1499 = vpop.f32.mrb[0].mxu0
  %v1500 = vadd.f32 %v1413, %v1499
  %v1501 = vpop.f32.mrb[0].mxu0
  %v1502 = vadd.f32 %v1413, %v1501
  %1503 = vdwg.mxu0
  %1504 = vmatprep.subr.mxu0 0.0
  %1505 = vmatpush1.xpose.msra.mxu0 %v1299
  %1506 = vmatprep.subr.mxu0 0.0
  %1507 = vmatpush1.xpose.msra.mxu0 %v1300
  %1508 = vmatprep.subr.mxu0 0.0
  %1509 = vmatpush1.xpose.msra.mxu0 %v1301
  %1510 = vmatprep.subr.mxu0 0.0
  %1511 = vmatpush1.xpose.msra.mxu0 %v1302
  %1512 = vmatprep.subr.mxu0 0.0
  %1513 = vmatpush1.xpose.msra.mxu0 %v1303
  %1514 = vmatprep.subr.mxu0 0.0
  %1515 = vmatpush1.xpose.msra.mxu0 %v1304
  %1516 = vmatprep.subr.mxu0 0.0
  %1517 = vmatpush1.xpose.msra.mxu0 %v1305
  %1518 = vmatprep.subr.mxu0 0.0
  %1519 = vmatpush1.xpose.msra.mxu0 %v1306
  %1520 = vmatprep.subr.mxu0 0.0
  %1521 = vmatpush1.xpose.msra.mxu0 %v1307
  %1522 = vmatprep.subr.mxu0 0.0
  %1523 = vmatpush1.xpose.msra.mxu0 %v1308
  %1524 = vmatprep.subr.mxu0 0.0
  %1525 = vmatpush1.xpose.msra.mxu0 %v1309
  %1526 = vmatprep.subr.mxu0 0.0
  %1527 = vmatpush1.xpose.msra.mxu0 %v1310
  %1528 = vmatprep.subr.mxu0 0.0
  %1529 = vmatpush1.xpose.msra.mxu0 %v1311
  %1530 = vmatprep.subr.mxu0 0.0
  %1531 = vmatpush1.xpose.msra.mxu0 %v1312
  %1532 = vmatprep.subr.mxu0 0.0
  %1533 = vmatpush1.xpose.msra.mxu0 %v1313
  %1534 = vmatprep.subr.mxu0 0.0
  %1535 = vmatpush1.xpose.msra.mxu0 %v1314
  %1536 = vmatprep.subr.mxu0 0.0
  %1537 = vmatpush1.xpose.msra.mxu0 %v1315
  %1538 = vmatprep.subr.mxu0 0.0
  %1539 = vmatpush1.xpose.msra.mxu0 %v1316
  %1540 = vmatprep.subr.mxu0 0.0
  %1541 = vmatpush1.xpose.msra.mxu0 %v1317
  %1542 = vmatprep.subr.mxu0 0.0
  %1543 = vmatpush1.xpose.msra.mxu0 %v1318
  %1544 = vmatprep.subr.mxu0 0.0
  %1545 = vmatpush1.xpose.msra.mxu0 %v1319
  %1546 = vmatprep.subr.mxu0 0.0
  %1547 = vmatpush1.xpose.msra.mxu0 %v1320
  %1548 = vmatprep.subr.mxu0 0.0
  %1549 = vmatpush1.xpose.msra.mxu0 %v1321
  %1550 = vmatprep.subr.mxu0 0.0
  %1551 = vmatpush1.xpose.msra.mxu0 %v1322
  %1552 = vmatprep.subr.mxu0 0.0
  %1553 = vmatpush1.xpose.msra.mxu0 %v1323
  %1554 = vmatprep.subr.mxu0 0.0
  %1555 = vmatpush1.xpose.msra.mxu0 %v1324
  %1556 = vmatprep.subr.mxu0 0.0
  %1557 = vmatpush1.xpose.msra.mxu0 %v1325
  %1558 = vmatprep.subr.mxu0 0.0
  %1559 = vmatpush1.xpose.msra.mxu0 %v1326
  %1560 = vmatprep.subr.mxu0 0.0
  %1561 = vmatpush1.xpose.msra.mxu0 %v1327
  %1562 = vmatprep.subr.mxu0 0.0
  %1563 = vmatpush1.xpose.msra.mxu0 %v1328
  %1564 = vmatprep.subr.mxu0 0.0
  %1565 = vmatpush1.xpose.msra.mxu0 %v1329
  %1566 = vmatprep.subr.mxu0 0.0
  %1567 = vmatpush1.xpose.msra.mxu0 %v1330
  %1568 = vmatprep.mubr.f32.mxu0 0.0
  %1569 = vmatmul.mubr.f32.gmra.mrb[0].mxu0 %v29
  %v1570 = vpop.f32.mrb[0].mxu0
  %v1571 = vadd.f32 %v1398, %v1570
  %v1572 = vpop.f32.mrb[0].mxu0
  %v1573 = vadd.f32 %v1398, %v1572
  %1574 = vmatprep.mubr.f32.mxu0 0.0
  %1575 = vmatmul.mubr.f32.gmra.mrb[0].mxu0 %v30
  %v1576 = vpop.f32.mrb[0].mxu0
  %v1577 = vadd.f32 %v1403, %v1576
  %v1578 = vpop.f32.mrb[0].mxu0
  %v1579 = vadd.f32 %v1403, %v1578
  %1580 = vmatprep.mubr.f32.mxu0 0.0
  %1581 = vmatmul.mubr.f32.gmra.mrb[0].mxu0 %v31
  %v1582 = vpop.f32.mrb[0].mxu0
  %v1583 = vadd.f32 %v1408, %v1582
  %v1584 = vpop.f32.mrb[0].mxu0
  %v1585 = vadd.f32 %v1408, %v1584
  %1586 = vmatprep.mubr.f32.mxu0 0.0
  %1587 = vmatmul.mubr.f32.gmra.mrb[0].mxu0 %v32
  %v1588 = vpop.f32.mrb[0].mxu0
  %v1589 = vadd.f32 %v1413, %v1588
  %v1590 = vpop.f32.mrb[0].mxu0
  %v1591 = vadd.f32 %v1413, %v1590
  %1592 = vdwg.mxu0
  %1593 = vmatprep.subr.mxu0 0.0
  %1594 = vmatpush1.xpose.msra.mxu0 %v1331
  %1595 = vmatprep.subr.mxu0 0.0
  %1596 = vmatpush1.xpose.msra.mxu0 %v1332
  %1597 = vmatprep.subr.mxu0 0.0
  %1598 = vmatpush1.xpose.msra.mxu0 %v1333
  %1599 = vmatprep.subr.mxu0 0.0
  %1600 = vmatpush1.xpose.msra.mxu0 %v1334
  %1601 = vmatprep.subr.mxu0 0.0
  %1602 = vmatpush1.xpose.msra.mxu0 %v1335
  %1603 = vmatprep.subr.mxu0 0.0
  %1604 = vmatpush1.xpose.msra.mxu0 %v1336
  %1605 = vmatprep.subr.mxu0 0.0
  %1606 = vmatpush1.xpose.msra.mxu0 %v1337
  %1607 = vmatprep.subr.mxu0 0.0
  %1608 = vmatpush1.xpose.msra.mxu0 %v1338
  %1609 = vmatprep.subr.mxu0 0.0
  %1610 = vmatpush1.xpose.msra.mxu0 %v1339
  %1611 = vmatprep.subr.mxu0 0.0
  %1612 = vmatpush1.xpose.msra.mxu0 %v1340
  %1613 = vmatprep.subr.mxu0 0.0
  %1614 = vmatpush1.xpose.msra.mxu0 %v1341
  %1615 = vmatprep.subr.mxu0 0.0
  %1616 = vmatpush1.xpose.msra.mxu0 %v1342
  %1617 = vmatprep.subr.mxu0 0.0
  %1618 = vmatpush1.xpose.msra.mxu0 %v1343
  %1619 = vmatprep.subr.mxu0 0.0
  %1620 = vmatpush1.xpose.msra.mxu0 %v1344
  %1621 = vmatprep.subr.mxu0 0.0
  %1622 = vmatpush1.xpose.msra.mxu0 %v1345
  %1623 = vmatprep.subr.mxu0 0.0
  %1624 = vmatpush1.xpose.msra.mxu0 %v1346
  %1625 = vmatprep.subr.mxu0 0.0
  %1626 = vmatpush1.xpose.msra.mxu0 %v1347
  %1627 = vmatprep.subr.mxu0 0.0
  %1628 = vmatpush1.xpose.msra.mxu0 %v1348
  %1629 = vmatprep.subr.mxu0 0.0
  %1630 = vmatpush1.xpose.msra.mxu0 %v1349
  %1631 = vmatprep.subr.mxu0 0.0
  %1632 = vmatpush1.xpose.msra.mxu0 %v1350
  %1633 = vmatprep.subr.mxu0 0.0
  %1634 = vmatpush1.xpose.msra.mxu0 %v1351
  %1635 = vmatprep.subr.mxu0 0.0
  %1636 = vmatpush1.xpose.msra.mxu0 %v1352
  %1637 = vmatprep.subr.mxu0 0.0
  %1638 = vmatpush1.xpose.msra.mxu0 %v1353
  %1639 = vmatprep.subr.mxu0 0.0
  %1640 = vmatpush1.xpose.msra.mxu0 %v1354
  %1641 = vmatprep.subr.mxu0 0.0
  %1642 = vmatpush1.xpose.msra.mxu0 %v1355
  %1643 = vmatprep.subr.mxu0 0.0
  %1644 = vmatpush1.xpose.msra.mxu0 %v1356
  %1645 = vmatprep.subr.mxu0 0.0
  %1646 = vmatpush1.xpose.msra.mxu0 %v1357
  %1647 = vmatprep.subr.mxu0 0.0
  %1648 = vmatpush1.xpose.msra.mxu0 %v1358
  %1649 = vmatprep.subr.mxu0 0.0
  %1650 = vmatpush1.xpose.msra.mxu0 %v1359
  %1651 = vmatprep.subr.mxu0 0.0
  %1652 = vmatpush1.xpose.msra.mxu0 %v1360
  %1653 = vmatprep.subr.mxu0 0.0
  %1654 = vmatpush1.xpose.msra.mxu0 %v1361
  %1655 = vmatprep.subr.mxu0 0.0
  %1656 = vmatpush1.xpose.msra.mxu0 %v1362
  %1657 = vmatprep.mubr.f32.mxu0 0.0
  %1658 = vmatmul.mubr.f32.gmra.mrb[0].mxu0 %v29
  %v1659 = vpop.f32.mrb[0].mxu0
  %v1660 = vadd.f32 %v1398, %v1659
  %v1661 = vpop.f32.mrb[0].mxu0
  %v1662 = vadd.f32 %v1398, %v1661
  %1663 = vmatprep.mubr.f32.mxu0 0.0
  %1664 = vmatmul.mubr.f32.gmra.mrb[0].mxu0 %v30
  %v1665 = vpop.f32.mrb[0].mxu0
  %v1666 = vadd.f32 %v1403, %v1665
  %v1667 = vpop.f32.mrb[0].mxu0
  %v1668 = vadd.f32 %v1403, %v1667
  %1669 = vmatprep.mubr.f32.mxu0 0.0
  %1670 = vmatmul.mubr.f32.gmra.mrb[0].mxu0 %v31
  %v1671 = vpop.f32.mrb[0].mxu0
  %v1672 = vadd.f32 %v1408, %v1671
  %v1673 = vpop.f32.mrb[0].mxu0
  %v1674 = vadd.f32 %v1408, %v1673
  %1675 = vmatprep.mubr.f32.mxu0 0.0
  %1676 = vmatmul.mubr.f32.gmra.mrb[0].mxu0 %v32
  %v1677 = vpop.f32.mrb[0].mxu0
  %v1678 = vadd.f32 %v1413, %v1677
  %v1679 = vpop.f32.mrb[0].mxu0
  %v1680 = vadd.f32 %v1413, %v1679
  %1681 = vdwg.mxu0
  %1682 = vmatprep.subr.mxu0 0.0
  %1683 = vmatpush1.xpose.msra.mxu0 %v1363
  %1684 = vmatprep.subr.mxu0 0.0
  %1685 = vmatpush1.xpose.msra.mxu0 %v1364
  %1686 = vmatprep.subr.mxu0 0.0
  %1687 = vmatpush1.xpose.msra.mxu0 %v1365
  %1688 = vmatprep.subr.mxu0 0.0
  %1689 = vmatpush1.xpose.msra.mxu0 %v1366
  %1690 = vmatprep.subr.mxu0 0.0
  %1691 = vmatpush1.xpose.msra.mxu0 %v1367
  %1692 = vmatprep.subr.mxu0 0.0
  %1693 = vmatpush1.xpose.msra.mxu0 %v1368
  %1694 = vmatprep.subr.mxu0 0.0
  %1695 = vmatpush1.xpose.msra.mxu0 %v1369
  %1696 = vmatprep.subr.mxu0 0.0
  %1697 = vmatpush1.xpose.msra.mxu0 %v1370
  %1698 = vmatprep.subr.mxu0 0.0
  %1699 = vmatpush1.xpose.msra.mxu0 %v1371
  %1700 = vmatprep.subr.mxu0 0.0
  %1701 = vmatpush1.xpose.msra.mxu0 %v1372
  %1702 = vmatprep.subr.mxu0 0.0
  %1703 = vmatpush1.xpose.msra.mxu0 %v1373
  %1704 = vmatprep.subr.mxu0 0.0
  %1705 = vmatpush1.xpose.msra.mxu0 %v1374
  %1706 = vmatprep.subr.mxu0 0.0
  %1707 = vmatpush1.xpose.msra.mxu0 %v1375
  %1708 = vmatprep.subr.mxu0 0.0
  %1709 = vmatpush1.xpose.msra.mxu0 %v1376
  %1710 = vmatprep.subr.mxu0 0.0
  %1711 = vmatpush1.xpose.msra.mxu0 %v1377
  %1712 = vmatprep.subr.mxu0 0.0
  %1713 = vmatpush1.xpose.msra.mxu0 %v1378
  %1714 = vmatprep.subr.mxu0 0.0
  %1715 = vmatpush1.xpose.msra.mxu0 %v1379
  %1716 = vmatprep.subr.mxu0 0.0
  %1717 = vmatpush1.xpose.msra.mxu0 %v1380
  %1718 = vmatprep.subr.mxu0 0.0
  %1719 = vmatpush1.xpose.msra.mxu0 %v1381
  %1720 = vmatprep.subr.mxu0 0.0
  %1721 = vmatpush1.xpose.msra.mxu0 %v1382
  %1722 = vmatprep.subr.mxu0 0.0
  %1723 = vmatpush1.xpose.msra.mxu0 %v1383
  %1724 = vmatprep.subr.mxu0 0.0
  %1725 = vmatpush1.xpose.msra.mxu0 %v1384
  %1726 = vmatprep.subr.mxu0 0.0
  %1727 = vmatpush1.xpose.msra.mxu0 %v1385
  %1728 = vmatprep.subr.mxu0 0.0
  %1729 = vmatpush1.xpose.msra.mxu0 %v1386
  %1730 = vmatprep.subr.mxu0 0.0
  %1731 = vmatpush1.xpose.msra.mxu0 %v1387
  %1732 = vmatprep.subr.mxu0 0.0
  %1733 = vmatpush1.xpose.msra.mxu0 %v1388
  %1734 = vmatprep.subr.mxu0 0.0
  %1735 = vmatpush1.xpose.msra.mxu0 %v1389
  %1736 = vmatprep.subr.mxu0 0.0
  %1737 = vmatpush1.xpose.msra.mxu0 %v1390
  %1738 = vmatprep.subr.mxu0 0.0
  %1739 = vmatpush1.xpose.msra.mxu0 %v1391
  %1740 = vmatprep.subr.mxu0 0.0
  %1741 = vmatpush1.xpose.msra.mxu0 %v1392
  %1742 = vmatprep.subr.mxu0 0.0
  %1743 = vmatpush1.xpose.msra.mxu0 %v1393
  %1744 = vmatprep.subr.mxu0 0.0
  %1745 = vmatpush1.xpose.msra.mxu0 %v1394
  %1746 = vmatprep.mubr.f32.mxu0 0.0
  %1747 = vmatmul.mubr.f32.gmra.mrb[0].mxu0 %v29
  %v1748 = vpop.f32.mrb[0].mxu0
  %v1749 = vadd.f32 %v1398, %v1748
  %v1750 = vpop.f32.mrb[0].mxu0
  %v1751 = vadd.f32 %v1398, %v1750
  %1752 = vmatprep.mubr.f32.mxu0 0.0
  %1753 = vmatmul.mubr.f32.gmra.mrb[0].mxu0 %v30
  %v1754 = vpop.f32.mrb[0].mxu0
  %v1755 = vadd.f32 %v1403, %v1754
  %v1756 = vpop.f32.mrb[0].mxu0
  %v1757 = vadd.f32 %v1403, %v1756
  %1758 = vmatprep.mubr.f32.mxu0 0.0
  %1759 = vmatmul.mubr.f32.gmra.mrb[0].mxu0 %v31
  %v1760 = vpop.f32.mrb[0].mxu0
  %v1761 = vadd.f32 %v1408, %v1760
  %v1762 = vpop.f32.mrb[0].mxu0
  %v1763 = vadd.f32 %v1408, %v1762
  %1764 = vmatprep.mubr.f32.mxu0 0.0
  %1765 = vmatmul.mubr.f32.gmra.mrb[0].mxu0 %v32
  %v1766 = vpop.f32.mrb[0].mxu0
  %v1767 = vadd.f32 %v1413, %v1766
  %v1768 = vpop.f32.mrb[0].mxu0
  %v1769 = vadd.f32 %v1413, %v1768
  %1770 = vdwg.mxu0
  %v1771 = vmax.f32 %v1482, 0.0
  %v1772 = vmax.f32 %v1484, 0.0
  %v1773 = vmax.f32 %v1571, 0.0
  %v1774 = vmax.f32 %v1573, 0.0
  %v1775 = vmax.f32 %v1660, 0.0
  %v1776 = vmax.f32 %v1662, 0.0
  %v1777 = vmax.f32 %v1749, 0.0
  %v1778 = vmax.f32 %v1751, 0.0
  %v1779 = vmax.f32 %v1488, 0.0
  %v1780 = vmax.f32 %v1490, 0.0
  %v1781 = vmax.f32 %v1577, 0.0
  %v1782 = vmax.f32 %v1579, 0.0
  %v1783 = vmax.f32 %v1666, 0.0
  %v1784 = vmax.f32 %v1668, 0.0
  %v1785 = vmax.f32 %v1755, 0.0
  %v1786 = vmax.f32 %v1757, 0.0
  %v1787 = vmax.f32 %v1494, 0.0
  %v1788 = vmax.f32 %v1496, 0.0
  %v1789 = vmax.f32 %v1583, 0.0
  %v1790 = vmax.f32 %v1585, 0.0
  %v1791 = vmax.f32 %v1672, 0.0
  %v1792 = vmax.f32 %v1674, 0.0
  %v1793 = vmax.f32 %v1761, 0.0
  %v1794 = vmax.f32 %v1763, 0.0
  %v1795 = vmax.f32 %v1500, 0.0
  %v1796 = vmax.f32 %v1502, 0.0
  %v1797 = vmax.f32 %v1589, 0.0
  %v1798 = vmax.f32 %v1591, 0.0
  %v1799 = vmax.f32 %v1678, 0.0
  %v1800 = vmax.f32 %v1680, 0.0
  %v1801 = vmax.f32 %v1767, 0.0
  %v1802 = vmax.f32 %v1769, 0.0
  %1803 = vset.pattern.permute.xlu0 0
  %1804 = vperm.xlu0 %1803, %v33
  %v1805 = vpop.permute.xlu0 %1804
  %1807 = vset.pattern.permute.xlu0 0
  %1808 = vperm.xlu0 %1807, %v34
  %v1809 = vpop.permute.xlu0 %1808
  %1811 = vset.pattern.permute.xlu0 0
  %1812 = vperm.xlu0 %1811, %v35
  %v1813 = vpop.permute.xlu0 %1812
  %1815 = vset.pattern.permute.xlu0 0
  %1816 = vperm.xlu0 %1815, %v36
  %v1817 = vpop.permute.xlu0 %1816
  %v1819 = vmul.f32 %v1771, %v1805
  %v1820 = vmul.f32 %v1772, %v1805
  %v1821 = vmul.f32 %v1773, %v1805
  %v1822 = vmul.f32 %v1774, %v1805
  %v1823 = vmul.f32 %v1775, %v1805
  %v1824 = vmul.f32 %v1776, %v1805
  %v1825 = vmul.f32 %v1777, %v1805
  %v1826 = vmul.f32 %v1778, %v1805
  %v1827 = vmul.f32 %v1779, %v1809
  %v1828 = vmul.f32 %v1780, %v1809
  %v1829 = vmul.f32 %v1781, %v1809
  %v1830 = vmul.f32 %v1782, %v1809
  %v1831 = vmul.f32 %v1783, %v1809
  %v1832 = vmul.f32 %v1784, %v1809
  %v1833 = vmul.f32 %v1785, %v1809
  %v1834 = vmul.f32 %v1786, %v1809
  %v1835 = vmul.f32 %v1787, %v1813
  %v1836 = vmul.f32 %v1788, %v1813
  %v1837 = vmul.f32 %v1789, %v1813
  %v1838 = vmul.f32 %v1790, %v1813
  %v1839 = vmul.f32 %v1791, %v1813
  %v1840 = vmul.f32 %v1792, %v1813
  %v1841 = vmul.f32 %v1793, %v1813
  %v1842 = vmul.f32 %v1794, %v1813
  %v1843 = vmul.f32 %v1795, %v1817
  %v1844 = vmul.f32 %v1796, %v1817
  %v1845 = vmul.f32 %v1797, %v1817
  %v1846 = vmul.f32 %v1798, %v1817
  %v1847 = vmul.f32 %v1799, %v1817
  %v1848 = vmul.f32 %v1800, %v1817
  %v1849 = vmul.f32 %v1801, %v1817
  %v1850 = vmul.f32 %v1802, %v1817
  %v1851 = vadd.f32 %v1819, %v1827
  %v1852 = vadd.f32 %v1851, %v1835
  %v1853 = vadd.f32 %v1852, %v1843
  %v1854 = vrot.slane %v1853, 4
  %v1855 = vadd.f32 %v1853, %v1854
  %v1856 = vrot.slane %v1855, 2
  %v1857 = vadd.f32 %v1855, %v1856
  %v1858 = vrot.slane %v1857, 1
  %v1859 = vadd.f32 %v1857, %v1858
  %v1860 = vadd.f32 %v1820, %v1828
  %v1861 = vadd.f32 %v1860, %v1836
  %v1862 = vadd.f32 %v1861, %v1844
  %v1863 = vrot.slane %v1862, 4
  %v1864 = vadd.f32 %v1862, %v1863
  %v1865 = vrot.slane %v1864, 2
  %v1866 = vadd.f32 %v1864, %v1865
  %v1867 = vrot.slane %v1866, 1
  %v1868 = vadd.f32 %v1866, %v1867
  %v1869 = vadd.f32 %v1821, %v1829
  %v1870 = vadd.f32 %v1869, %v1837
  %v1871 = vadd.f32 %v1870, %v1845
  %v1872 = vrot.slane %v1871, 4
  %v1873 = vadd.f32 %v1871, %v1872
  %v1874 = vrot.slane %v1873, 2
  %v1875 = vadd.f32 %v1873, %v1874
  %v1876 = vrot.slane %v1875, 1
  %v1877 = vadd.f32 %v1875, %v1876
  %v1878 = vadd.f32 %v1822, %v1830
  %v1879 = vadd.f32 %v1878, %v1838
  %v1880 = vadd.f32 %v1879, %v1846
  %v1881 = vrot.slane %v1880, 4
  %v1882 = vadd.f32 %v1880, %v1881
  %v1883 = vrot.slane %v1882, 2
  %v1884 = vadd.f32 %v1882, %v1883
  %v1885 = vrot.slane %v1884, 1
  %v1886 = vadd.f32 %v1884, %v1885
  %v1887 = vadd.f32 %v1823, %v1831
  %v1888 = vadd.f32 %v1887, %v1839
  %v1889 = vadd.f32 %v1888, %v1847
  %v1890 = vrot.slane %v1889, 4
  %v1891 = vadd.f32 %v1889, %v1890
  %v1892 = vrot.slane %v1891, 2
  %v1893 = vadd.f32 %v1891, %v1892
  %v1894 = vrot.slane %v1893, 1
  %v1895 = vadd.f32 %v1893, %v1894
  %v1896 = vadd.f32 %v1824, %v1832
  %v1897 = vadd.f32 %v1896, %v1840
  %v1898 = vadd.f32 %v1897, %v1848
  %v1899 = vrot.slane %v1898, 4
  %v1900 = vadd.f32 %v1898, %v1899
  %v1901 = vrot.slane %v1900, 2
  %v1902 = vadd.f32 %v1900, %v1901
  %v1903 = vrot.slane %v1902, 1
  %v1904 = vadd.f32 %v1902, %v1903
  %v1905 = vadd.f32 %v1825, %v1833
  %v1906 = vadd.f32 %v1905, %v1841
  %v1907 = vadd.f32 %v1906, %v1849
  %v1908 = vrot.slane %v1907, 4
  %v1909 = vadd.f32 %v1907, %v1908
  %v1910 = vrot.slane %v1909, 2
  %v1911 = vadd.f32 %v1909, %v1910
  %v1912 = vrot.slane %v1911, 1
  %v1913 = vadd.f32 %v1911, %v1912
  %v1914 = vadd.f32 %v1826, %v1834
  %v1915 = vadd.f32 %v1914, %v1842
  %v1916 = vadd.f32 %v1915, %v1850
  %v1917 = vrot.slane %v1916, 4
  %v1918 = vadd.f32 %v1916, %v1917
  %v1919 = vrot.slane %v1918, 2
  %v1920 = vadd.f32 %v1918, %v1919
  %v1921 = vrot.slane %v1920, 1
  %v1922 = vadd.f32 %v1920, %v1921
  %v1923 = vstv %s42
  %v1924 = vadd.f32 %v1859, %v1923
  %v1925 = vadd.f32 %v1868, %v1923
  %v1926 = vadd.f32 %v1877, %v1923
  %v1927 = vadd.f32 %v1886, %v1923
  %v1928 = vadd.f32 %v1895, %v1923
  %v1929 = vadd.f32 %v1904, %v1923
  %v1930 = vadd.f32 %v1913, %v1923
  %v1931 = vadd.f32 %v1922, %v1923
  %v1932 = vxor.u32 %v1924, 2147483648
  %v1933 = vxor.u32 %v1925, 2147483648
  %v1934 = vxor.u32 %v1926, 2147483648
  %v1935 = vxor.u32 %v1927, 2147483648
  %v1936 = vxor.u32 %v1928, 2147483648
  %v1937 = vxor.u32 %v1929, 2147483648
  %v1938 = vxor.u32 %v1930, 2147483648
  %v1939 = vxor.u32 %v1931, 2147483648
  %v1940 = vmul.f32 %v1932, 1.442695
  %v1941 = vpow.pop %v1940
  %v1942 = vmul.f32 %v1933, 1.442695
  %v1943 = vpow.pop %v1942
  %v1944 = vmul.f32 %v1934, 1.442695
  %v1945 = vpow.pop %v1944
  %v1946 = vmul.f32 %v1935, 1.442695
  %v1947 = vpow.pop %v1946
  %v1948 = vmul.f32 %v1936, 1.442695
  %v1949 = vpow.pop %v1948
  %v1950 = vmul.f32 %v1937, 1.442695
  %v1951 = vpow.pop %v1950
  %v1952 = vmul.f32 %v1938, 1.442695
  %v1953 = vpow.pop %v1952
  %v1954 = vmul.f32 %v1939, 1.442695
  %v1955 = vpow.pop %v1954
  %v1956 = vadd.f32 %v1941, 1.0
  %v1957 = vadd.f32 %v1943, 1.0
  %v1958 = vadd.f32 %v1945, 1.0
  %v1959 = vadd.f32 %v1947, 1.0
  %v1960 = vadd.f32 %v1949, 1.0
  %v1961 = vadd.f32 %v1951, 1.0
  %v1962 = vadd.f32 %v1953, 1.0
  %v1963 = vadd.f32 %v1955, 1.0
  %v1964 = vrcp.pop %v1956
  %v1965 = vmul.f32 1.0, %v1964
  %v1966 = vrcp.pop %v1957
  %v1967 = vmul.f32 1.0, %v1966
  %v1968 = vrcp.pop %v1958
  %v1969 = vmul.f32 1.0, %v1968
  %v1970 = vrcp.pop %v1959
  %v1971 = vmul.f32 1.0, %v1970
  %v1972 = vrcp.pop %v1960
  %v1973 = vmul.f32 1.0, %v1972
  %v1974 = vrcp.pop %v1961
  %v1975 = vmul.f32 1.0, %v1974
  %v1976 = vrcp.pop %v1962
  %v1977 = vmul.f32 1.0, %v1976
  %v1978 = vrcp.pop %v1963
  %v1979 = vmul.f32 1.0, %v1978
  %v1988 = vcombine.low %v1965, %v1967
  %v1989 = vcombine.low %v1969, %v1971
  %v1990 = vcombine.low %v1973, %v1975
  %v1991 = vcombine.low %v1977, %v1979
  %v1993 = vunpack.c.l.s4 1966171168
  %v1994 = vunpack.c.0.s8 %v1993
  %v1995 = vlaneseq
  %v1996 = vshrl.u32 %v1995, 7
  %v1997 = vsub.s32 %v1994, %v1996
  %v1998 = vrot.slane %v1988, %v1997
  %v2000 = vunpack.c.l.s4 1966171168
  %v2001 = vunpack.c.0.s8 %v2000
  %v2002 = vlaneseq
  %v2003 = vshrl.u32 %v2002, 7
  %v2004 = vsub.s32 %v2001, %v2003
  %v2005 = vrot.slane %v1989, %v2004
  %v2007 = vunpack.c.l.s4 1966171168
  %v2008 = vunpack.c.0.s8 %v2007
  %v2009 = vlaneseq
  %v2010 = vshrl.u32 %v2009, 7
  %v2011 = vsub.s32 %v2008, %v2010
  %v2012 = vrot.slane %v1990, %v2011
  %v2014 = vunpack.c.l.s4 1966171168
  %v2015 = vunpack.c.0.s8 %v2014
  %v2016 = vlaneseq
  %v2017 = vshrl.u32 %v2016, 7
  %v2018 = vsub.s32 %v2015, %v2017
  %v2019 = vrot.slane %v1991, %v2018
  %v2020 = vcombine.low %v1998, %v2005
  %v2021 = vcombine.low %v2012, %v2019
  %v2023 = vunpack.c.l.s4 1966171168
  %v2024 = vunpack.c.0.s8 %v2023
  %v2025 = vlaneseq
  %v2026 = vshrl.u32 %v2025, 7
  %v2027 = vsub.s32 %v2024, %v2026
  %v2028 = vrot.slane %v2020, %v2027
  %v2030 = vunpack.c.l.s4 1966171168
  %v2031 = vunpack.c.0.s8 %v2030
  %v2032 = vlaneseq
  %v2033 = vshrl.u32 %v2032, 7
  %v2034 = vsub.s32 %v2031, %v2033
  %v2035 = vrot.slane %v2021, %v2034
  %v2036 = vcombine.low %v2028, %v2035
  %2038 = vst [vmem:[%s5] sm:$0xff] %v2036
  // Predicated region
  $region22: #{_forward_parts.1} parent=0 // pred_check
    _
  $region23: #{_forward_parts.1} parent=0 // pred_check_branch
    %2040 = sbr.rel (0) target = $region25
  $region24: #{_forward_parts.1} parent=0 // pred_region
    _
  $region25: #{_forward_parts.1} parent=0 // pred_fallthru
    _
  // Predicated region
  $region26: #{_forward_parts.1} parent=0 // pred_check
    _
  $region27: #{_forward_parts.1} parent=0 // pred_check_branch
    %2042 = sbr.rel (0) target = $region29
  $region28: #{_forward_parts.1} parent=0 // pred_region
    _
  $region29: #{_forward_parts.1} parent=0 // pred_fallthru
    _

</llo_original>
